<compile_context>
chip_gen: v6e
topology: v6e:2x2x1
jax: 0.10.0
libtpu: 0.0.40
codegen_flags: <defaults>
</compile_context>

<pallas_src>
import functools
import math

import jax
import jax.numpy as jnp
from jax import lax
from jax.experimental import pallas as pl
from jax.experimental.pallas import tpu as pltpu

LN_EPS = 1e-12
MASK_NEG = float(jnp.finfo(jnp.float32).min)   # matches HF extended attention mask
ACT_DTYPE = jnp.bfloat16                       # activations / matmul weights


# ----------------------------- tiling helpers ------------------------------

def _round_up(x, m):
    return ((x + m - 1) // m) * m


def _pick_rows(m, max_tm=512):
    """Return (padded_rows, row_tile).

    Prefers large row tiles (per-grid-step overhead ~0.35us dominates small
    tiles) and pads awkward row counts instead of degenerating to one giant
    block or 8/16-row tiles."""
    m8 = _round_up(m, 8)
    if m8 <= max_tm:
        return m8, m8                           # single block
    for tm in (1024, 512, 256, 128):
        if tm <= max_tm and m8 % tm == 0:
            return m8, tm
    tm = min(128, max_tm)
    return _round_up(m8, tm), tm


def _pad_rows(x2d, m_pad):
    m = x2d.shape[0]
    if m_pad == m:
        return x2d
    return jnp.pad(x2d, ((0, m_pad - m), (0, 0)))


def _k_block(k):
    """Largest lane-aligned K-tile that divides k; else the full extent."""
    for cand in (512, 256, 128):
        if k % cand == 0:
            return cand
    return k


def _block_bytes(*specs):
    return sum(math.prod(shape) * jnp.dtype(dtype).itemsize for shape, dtype in specs)


@functools.lru_cache(maxsize=None)
def _vmem_budget():
    # Keep the scoped limit safely below physical VMEM (64 MiB/TC on v7x,
    # 128 MiB on v5e/v6e) so the pipeliner keeps multi-deep buffers + headroom.
    try:
        cap = pltpu.get_tpu_info().vmem_capacity_bytes
    except Exception:
        cap = 64 << 20                          # conservative: v7x per-TC VMEM
    return int(cap * 3 // 4)


def _compiler_params(dims, block_bytes):
    limit = int(min(_vmem_budget(), max(40 << 20, 3 * block_bytes + (8 << 20))))
    return pltpu.CompilerParams(dimension_semantics=dims, vmem_limit_bytes=limit)


def _maybe_buffered(shape, index_map, depth):
    # 3-deep buffering for weight streams whose block index changes every step;
    # falls back cleanly if this Pallas version lacks pipeline_mode/Buffered.
    try:
        return pl.BlockSpec(shape, index_map, pipeline_mode=pl.Buffered(depth))
    except Exception:
        return pl.BlockSpec(shape, index_map)


# ----------------------------- math helpers --------------------------------

def _layernorm(x, gamma, beta):
    # PyTorch nn.LayerNorm: biased variance over the last dim (f32 math).
    mean = jnp.mean(x, axis=-1, keepdims=True)
    var = jnp.mean(jnp.square(x - mean), axis=-1, keepdims=True)
    return (x - mean) * lax.rsqrt(var + LN_EPS) * gamma + beta


def _erf(x):
    # Abramowitz & Stegun 7.1.26 (|err| <= 1.5e-7): erf built from exp (EUP) +
    # approx reciprocal (EUP) + VPU ops so it lowers on Mosaic and matches HF's
    # exact-erf "gelu" numerics at bf16 activation precision.
    a1, a2, a3, a4, a5 = 0.254829592, -0.284496736, 1.421413741, -1.453152027, 1.061405429
    p = 0.3275911
    sign = jnp.where(x >= 0.0, 1.0, -1.0)
    ax = jnp.abs(x)
    t = pl.reciprocal(1.0 + p * ax, approx=True)
    poly = ((((a5 * t + a4) * t + a3) * t + a2) * t + a1) * t
    # TODO(synk): if gelu_new numerics are acceptable, a tanh-approx GELU
    # (1 EUP tanh + ~4 VPU ops) roughly halves the FFN's VALU work.
    return sign * (1.0 - poly * jnp.exp(-ax * ax))


def _gelu(x):
    return 0.5 * x * (1.0 + _erf(x * 0.7071067811865476))


# ------------------------------- kernels ----------------------------------

def embed_ln_kernel(emb_ref, g_ref, b_ref, out_ref):
    # BertEmbeddings: LayerNorm(word_emb + pos_emb); bf16 input, f32 LN stats.
    x = emb_ref[...].astype(jnp.float32)
    out_ref[...] = _layernorm(x, g_ref[...], b_ref[...]).astype(out_ref.dtype)


def dense_kernel(x_ref, w_ref, b_ref, out_ref):
    # y = x @ W + b (bf16 operands, f32 accumulation on the MXU).
    acc = jnp.dot(x_ref[...], w_ref[...], preferred_element_type=jnp.float32)
    out_ref[...] = (acc + b_ref[...]).astype(out_ref.dtype)


def attn_core_kernel(q_ref, k_ref, v_ref, mask_ref, out_ref, *,
                     heads, head_dim, q_off=0, k_off=0, v_off=0):
    # One (batch, head-group) tile of softmax(Q K^T + mask) V.  Q/K/V are
    # static lane-slices of the fused QKV projection kept in (B, S, *) layout,
    # so there are no XLA head transposes and the (1, S, Hgroup) output store
    # is lane-dense.  The 1/sqrt(head_dim) scale is folded into the query
    # projection weights.  Per-head scores stay (S, S) f32 (small VMEM).
    mask = mask_ref[0]                                           # (1, S) f32
    for j in range(heads):                                       # static unroll
        lo = j * head_dim
        q = q_ref[0, :, q_off + lo: q_off + lo + head_dim]       # (S, hd) bf16
        k = k_ref[0, :, k_off + lo: k_off + lo + head_dim]
        v = v_ref[0, :, v_off + lo: v_off + lo + head_dim]
        s = lax.dot_general(q, k, (((1,), (1,)), ((), ())),
                            preferred_element_type=jnp.float32)  # (S, S)
        s = s + mask
        s = s - jnp.max(s, axis=-1, keepdims=True)
        p = jnp.exp(s)
        p = p * pl.reciprocal(jnp.sum(p, axis=-1, keepdims=True), approx=True)
        ctx = jnp.dot(p.astype(v.dtype), v, preferred_element_type=jnp.float32)
        out_ref[0, :, lo: lo + head_dim] = ctx.astype(out_ref.dtype)


def dense_res_ln_kernel(x_ref, res_ref, w_ref, b_ref, g_ref, beta_ref, out_ref):
    # BertSelfOutput: LayerNorm(x @ W + b + residual)
    y = jnp.dot(x_ref[...], w_ref[...], preferred_element_type=jnp.float32)
    y = y + b_ref[...] + res_ref[...].astype(jnp.float32)
    out_ref[...] = _layernorm(y, g_ref[...], beta_ref[...]).astype(out_ref.dtype)


def ffn_kernel(x_ref, wi_ref, bi_ref, wo2_ref, bo2_ref, g_ref, beta_ref,
               out_ref, acc_ref):
    # BertIntermediate + BertOutput, K-tiled over the intermediate dimension:
    #   out = LN( sum_k gelu(x @ Wi[:, k] + bi[k]) @ Wo2[k, :] + bo2 + x )
    k = pl.program_id(1)

    @pl.when(k == 0)
    def _():
        acc_ref[...] = jnp.zeros_like(acc_ref)

    inter = jnp.dot(x_ref[...], wi_ref[...], preferred_element_type=jnp.float32)
    inter = _gelu(inter + bi_ref[...])
    acc_ref[...] += jnp.dot(inter.astype(wo2_ref.dtype), wo2_ref[...],
                            preferred_element_type=jnp.float32)

    @pl.when(k == pl.num_programs(1) - 1)
    def _():
        y = acc_ref[...] + bo2_ref[...] + x_ref[...].astype(jnp.float32)
        out_ref[...] = _layernorm(y, g_ref[...], beta_ref[...]).astype(out_ref.dtype)


def pooler_kernel(x0_ref, w1_ref, b1_ref, w2_ref, b2_ref, out_ref):
    # BertPooler: Linear(H, H) -> Tanh -> (Dropout = id) -> Linear(H, labels)
    h = jnp.tanh(jnp.dot(x0_ref[...], w1_ref[...],
                         preferred_element_type=jnp.float32) + b1_ref[...])
    out_ref[...] = (jnp.dot(h.astype(w2_ref.dtype), w2_ref[...],
                            preferred_element_type=jnp.float32)
                    + b2_ref[...]).astype(out_ref.dtype)


# ------------------------------ wrappers -----------------------------------

def embed_layernorm(emb, gamma, beta):
    B, S, H = emb.shape
    M = B * S
    m_pad, tm = _pick_rows(M)
    x2d = _pad_rows(emb.reshape(M, H), m_pad)
    out = pl.pallas_call(
        embed_ln_kernel,
        grid=(m_pad // tm,),
        out_shape=jax.ShapeDtypeStruct((m_pad, H), ACT_DTYPE),
        in_specs=[pl.BlockSpec((tm, H), lambda i: (i, 0)),
                  pl.BlockSpec((1, H), lambda i: (0, 0)),
                  pl.BlockSpec((1, H), lambda i: (0, 0))],
        out_specs=pl.BlockSpec((tm, H), lambda i: (i, 0)),
        compiler_params=_compiler_params(
            ("parallel",),
            _block_bytes(((tm, H), ACT_DTYPE), ((tm, H), ACT_DTYPE),
                         ((tm, H), jnp.float32), ((2, H), jnp.float32))),
    )(x2d, gamma, beta)
    return out[:M].reshape(B, S, H)


def dense(x2d, w, b):
    M, K = x2d.shape
    N = w.shape[1]
    m_pad, tm = _pick_rows(M)
    xp = _pad_rows(x2d, m_pad)
    out = pl.pallas_call(
        dense_kernel,
        grid=(m_pad // tm,),
        out_shape=jax.ShapeDtypeStruct((m_pad, N), ACT_DTYPE),
        in_specs=[pl.BlockSpec((tm, K), lambda i: (i, 0)),
                  pl.BlockSpec((K, N), lambda i: (0, 0)),
                  pl.BlockSpec((1, N), lambda i: (0, 0))],
        out_specs=pl.BlockSpec((tm, N), lambda i: (i, 0)),
        compiler_params=_compiler_params(
            ("parallel",),
            _block_bytes(((tm, K), ACT_DTYPE), ((K, N), ACT_DTYPE),
                         ((1, N), jnp.float32), ((tm, N), jnp.float32),
                         ((tm, N), ACT_DTYPE))),
    )(xp, w, b)
    return out[:M]


def attn_core(qkv3, mask_add3, num_heads, head_dim):
    """softmax((QK^T)/sqrt(hd) + mask) V from the fused (B, S, 3H) projection.

    When H is lane-aligned (H % 128 == 0) the heads are split into one or two
    lane-dense head groups (grid = (B, n_groups)); q/k/v group slices are fed
    as three BlockSpec views of the same qkv array so nothing is re-read.
    Otherwise (toy shapes) the full (1, S, 3H) block is brought in and sliced
    with static in-kernel offsets."""
    B, S, threeH = qkv3.shape
    H = num_heads * head_dim

    if H % 128 == 0:
        n_groups = 2 if (num_heads % 2 == 0 and (H // 2) % 128 == 0) else 1
        gh = num_heads // n_groups
        gw = gh * head_dim
        kernel = functools.partial(attn_core_kernel, heads=gh, head_dim=head_dim)
        in_specs = [
            pl.BlockSpec((1, S, gw), lambda b, g: (b, 0, g)),
            pl.BlockSpec((1, S, gw), lambda b, g: (b, 0, n_groups + g)),
            pl.BlockSpec((1, S, gw), lambda b, g: (b, 0, 2 * n_groups + g)),
            pl.BlockSpec((1, 1, S), lambda b, g: (b, 0, 0)),
        ]
        out_spec = pl.BlockSpec((1, S, gw), lambda b, g: (b, 0, g))
        grid = (B, n_groups)
        dims = ("parallel", "parallel")
        block_bytes = _block_bytes(((4, S, gw), ACT_DTYPE), ((3, S, S), jnp.float32),
                                   ((1, S), jnp.float32))
    else:
        # Non-lane-aligned H (small test shapes): full qkv block, static offsets.
        kernel = functools.partial(attn_core_kernel, heads=num_heads,
                                   head_dim=head_dim, q_off=0, k_off=H, v_off=2 * H)
        in_specs = [pl.BlockSpec((1, S, threeH), lambda b: (b, 0, 0))] * 3 + \
                   [pl.BlockSpec((1, 1, S), lambda b: (b, 0, 0))]
        out_spec = pl.BlockSpec((1, S, H), lambda b: (b, 0, 0))
        grid = (B,)
        dims = ("parallel",)
        block_bytes = _block_bytes(((3, S, threeH), ACT_DTYPE), ((S, H), ACT_DTYPE),
                                   ((3, S, S), jnp.float32))

    return pl.pallas_call(
        kernel,
        grid=grid,
        out_shape=jax.ShapeDtypeStruct((B, S, H), ACT_DTYPE),
        in_specs=in_specs,
        out_specs=out_spec,
        compiler_params=_compiler_params(dims, block_bytes),
    )(qkv3, qkv3, qkv3, mask_add3)


def dense_res_ln(x2d, res2d, w, b, gamma, beta):
    M, K = x2d.shape
    N = w.shape[1]
    m_pad, tm = _pick_rows(M)
    xp = _pad_rows(x2d, m_pad)
    rp = _pad_rows(res2d, m_pad)
    out = pl.pallas_call(
        dense_res_ln_kernel,
        grid=(m_pad // tm,),
        out_shape=jax.ShapeDtypeStruct((m_pad, N), ACT_DTYPE),
        in_specs=[pl.BlockSpec((tm, K), lambda i: (i, 0)),
                  pl.BlockSpec((tm, N), lambda i: (i, 0)),
                  pl.BlockSpec((K, N), lambda i: (0, 0)),
                  pl.BlockSpec((1, N), lambda i: (0, 0)),
                  pl.BlockSpec((1, N), lambda i: (0, 0)),
                  pl.BlockSpec((1, N), lambda i: (0, 0))],
        out_specs=pl.BlockSpec((tm, N), lambda i: (i, 0)),
        compiler_params=_compiler_params(
            ("parallel",),
            _block_bytes(((tm, K), ACT_DTYPE), ((tm, N), ACT_DTYPE),
                         ((K, N), ACT_DTYPE), ((tm, N), jnp.float32),
                         ((3, N), jnp.float32), ((tm, N), ACT_DTYPE))),
    )(xp, rp, w, b, gamma, beta)
    return out[:M]


def ffn(x2d, wi, bi, wo2, bo2, gamma, beta):
    M, H = x2d.shape
    I = wi.shape[1]
    # Large row tiles: wi/wo2 (the big weights) are re-streamed once per m-tile,
    # so tm up to 1024 keeps the FFN MXU-bound instead of weight-DMA-bound.
    m_pad, tm = _pick_rows(M, max_tm=1024)
    tk = _k_block(I)
    k_steps = I // tk
    xp = _pad_rows(x2d, m_pad)
    if k_steps >= 3:
        wi_spec = _maybe_buffered((H, tk), lambda i, k: (0, k), 3)
        wo2_spec = _maybe_buffered((tk, H), lambda i, k: (k, 0), 3)
    else:
        wi_spec = pl.BlockSpec((H, tk), lambda i, k: (0, k))
        wo2_spec = pl.BlockSpec((tk, H), lambda i, k: (k, 0))
    out = pl.pallas_call(
        ffn_kernel,
        grid=(m_pad // tm, k_steps),
        out_shape=jax.ShapeDtypeStruct((m_pad, H), ACT_DTYPE),
        in_specs=[pl.BlockSpec((tm, H), lambda i, k: (i, 0)),
                  wi_spec,
                  pl.BlockSpec((1, tk), lambda i, k: (0, k)),
                  wo2_spec,
                  pl.BlockSpec((1, H), lambda i, k: (0, 0)),
                  pl.BlockSpec((1, H), lambda i, k: (0, 0)),
                  pl.BlockSpec((1, H), lambda i, k: (0, 0))],
        out_specs=pl.BlockSpec((tm, H), lambda i, k: (i, 0)),
        scratch_shapes=[pltpu.VMEM((tm, H), jnp.float32)],
        compiler_params=_compiler_params(
            ("parallel", "arbitrary"),
            _block_bytes(((tm, H), ACT_DTYPE), ((H, tk), ACT_DTYPE),
                         ((tm, tk), jnp.float32), ((tk, H), ACT_DTYPE),
                         ((1, tk), jnp.float32), ((3, H), jnp.float32),
                         ((tm, H), ACT_DTYPE), ((tm, H), jnp.float32))),
    )(xp, wi, bi, wo2, bo2, gamma, beta)
    return out[:M]


def pooler(x0, w1, b1, w2, b2):
    B, H = x0.shape
    L = w2.shape[1]
    return pl.pallas_call(
        pooler_kernel,
        grid=(1,),
        out_shape=jax.ShapeDtypeStruct((B, L), jnp.float32),
        in_specs=[pl.BlockSpec((B, H), lambda i: (0, 0)),
                  pl.BlockSpec((H, H), lambda i: (0, 0)),
                  pl.BlockSpec((1, H), lambda i: (0, 0)),
                  pl.BlockSpec((H, L), lambda i: (0, 0)),
                  pl.BlockSpec((1, L), lambda i: (0, 0))],
        out_specs=pl.BlockSpec((B, L), lambda i: (0, 0)),
        compiler_params=_compiler_params(
            ("arbitrary",),
            _block_bytes(((B, H), ACT_DTYPE), ((H, H), ACT_DTYPE),
                         ((H, L), ACT_DTYPE), ((B, L), jnp.float32))),
    )(x0, w1, b1, w2, b2)


# ---------------------------- model glue -----------------------------------

def bert_layer(h, mask_add3, p, num_heads):
    B, S, H = h.shape
    hd = H // num_heads
    x2d = h.reshape(B * S, H)

    # Fused QKV projection with batch folded into the matmul M dimension; the
    # 1/sqrt(hd) attention scale is pre-folded into the query weights.
    qkv = dense(x2d, p["wqkv"], p["bqkv"])                  # (B*S, 3H) bf16

    # Attention entirely in (B, S, *) layout: no XLA head split/merge
    # transposes and no hd-wide minor-dim q/k/v/ctx arrays in HBM.
    ctx = attn_core(qkv.reshape(B, S, 3 * H), mask_add3, num_heads, hd)

    # BertSelfOutput: dense + residual + LayerNorm (M = B*S).
    x1 = dense_res_ln(ctx.reshape(B * S, H), x2d,
                      p["wo"], p["bo"], p["ln1_g"], p["ln1_b"])

    # BertIntermediate + BertOutput, K-tiled over the intermediate dim.
    y = ffn(x1, p["wi"], p["bi"], p["wo2"], p["bo2"], p["ln2_g"], p["ln2_b"])
    return y.reshape(B, S, H)


def sentiment_forward(params, input_ids, attention_mask, num_heads):
    B, S = input_ids.shape
    # BertEmbeddings: the reference forward adds only word + absolute position
    # embeddings (no token_type term).  Gathers are data-dependent -> plain
    # JAX; the sum is cast to bf16 so the LN kernel's HBM read is halved.
    emb = (params["word_emb"][input_ids]
           + params["pos_emb"][:S][None, :, :]).astype(ACT_DTYPE)
    h = embed_layernorm(emb, params["emb_ln_g"], params["emb_ln_b"])

    # HF get_extended_attention_mask: (1 - mask) * finfo(f32).min -> (B, 1, S).
    mask_add3 = (1.0 - attention_mask.astype(jnp.float32))[:, None, :] * MASK_NEG

    # TODO(synk): cross-pallas_call prefetch of the next layer's weights (P10)
    # would hide per-layer weight DMA behind the previous layer's FFN compute.
    for lp in params["layers"]:
        h = bert_layer(h, mask_add3, lp, num_heads)

    # BertPooler on the [CLS] token.
    return pooler(h[:, 0, :], params["pool_w1"], params["pool_b1"],
                  params["pool_w2"], params["pool_b2"])


def init_params(key, *, vocab, max_pos, hidden, heads, intermediate, layers, labels):
    head_dim = hidden // heads
    q_scale = 1.0 / math.sqrt(head_dim)

    def dense_w(k, din, dout, scale=1.0):
        w = 0.02 * jax.random.normal(k, (din, dout), jnp.float32)
        return (w * scale).astype(ACT_DTYPE)

    keys = iter(jax.random.split(key, 8 + 8 * layers))
    word_emb = 0.02 * jax.random.normal(next(keys), (vocab, hidden), jnp.float32)
    word_emb = word_emb.at[0].set(0.0)  # padding_idx = 0
    params = {
        "word_emb": word_emb,
        "pos_emb": 0.02 * jax.random.normal(next(keys), (max_pos, hidden), jnp.float32),
        "emb_ln_g": jnp.ones((1, hidden), jnp.float32),
        "emb_ln_b": jnp.zeros((1, hidden), jnp.float32),
        "layers": [],
        "pool_w1": dense_w(next(keys), hidden, hidden),
        "pool_b1": jnp.zeros((1, hidden), jnp.float32),
        "pool_w2": dense_w(next(keys), hidden, labels),
        "pool_b2": jnp.zeros((1, labels), jnp.float32),
    }
    for _ in range(layers):
        kq, kk, kv, ko, ki, ko2 = jax.random.split(next(keys), 6)
        lp = {
            # query/key/value Linear layers fused into one (H, 3H) matmul; the
            # 1/sqrt(head_dim) score scale is folded into the query weights
            # (with pretrained weights the query bias must be scaled too —
            # it is zero here, so the exact reparameterization holds).
            "wqkv": jnp.concatenate([dense_w(kq, hidden, hidden, q_scale),
                                     dense_w(kk, hidden, hidden),
                                     dense_w(kv, hidden, hidden)], axis=1),
            "bqkv": jnp.zeros((1, 3 * hidden), jnp.float32),
            "wo": dense_w(ko, hidden, hidden),
            "bo": jnp.zeros((1, hidden), jnp.float32),
            "ln1_g": jnp.ones((1, hidden), jnp.float32),
            "ln1_b": jnp.zeros((1, hidden), jnp.float32),
            "wi": dense_w(ki, hidden, intermediate),
            "bi": jnp.zeros((1, intermediate), jnp.float32),
            "wo2": dense_w(ko2, intermediate, hidden),
            "bo2": jnp.zeros((1, hidden), jnp.float32),
            "ln2_g": jnp.ones((1, hidden), jnp.float32),
            "ln2_b": jnp.zeros((1, hidden), jnp.float32),
        }
        params["layers"].append(lp)
    return params


if __name__ == "__main__":
    # Small, BERT-consistent smoke-test config.  (For perf measurements use
    # lane-dense sizes, e.g. HIDDEN=768, SEQ=128 — these toy shapes under-fill
    # the 128-lane vregs and the MXU.)
    VOCAB, MAX_POS, HIDDEN, HEADS, INTER, LAYERS, LABELS = 50, 16, 32, 4, 64, 2, 3
    BATCH, SEQ = 2, 8

    key = jax.random.PRNGKey(0)
    kp, kid = jax.random.split(key)
    params = init_params(kp, vocab=VOCAB, max_pos=MAX_POS, hidden=HIDDEN,
                         heads=HEADS, intermediate=INTER, layers=LAYERS,
                         labels=LABELS)

    input_ids = jax.random.randint(kid, (BATCH, SEQ), 1, VOCAB, dtype=jnp.int32)
    attention_mask = jnp.ones((BATCH, SEQ), jnp.int32)
    attention_mask = attention_mask.at[1, 6:].set(0)   # exercise the additive mask

    fwd = jax.jit(functools.partial(sentiment_forward, num_heads=HEADS))
    logits = fwd(params, input_ids, attention_mask)
    jax.block_until_ready(logits)
    assert logits.shape == (BATCH, LABELS) and logits.dtype == jnp.float32
    print("KERNEL_OK")
</pallas_src>

<mosaic_0001>
module attributes {stable_mosaic.version = 11 : i64} {
  func.func @dense_kernel(%arg0: i32, %arg1: memref<16x32xbf16, #tpu.memory_space<vmem>>, %arg2: memref<32x96xbf16, #tpu.memory_space<vmem>>, %arg3: memref<1x96xf32, #tpu.memory_space<vmem>>, %arg4: memref<16x96xbf16, #tpu.memory_space<vmem>>) attributes {dimension_semantics = [#tpu.dimension_semantics<parallel>], iteration_bounds = array<i64: 1>, scalar_prefetch = 0 : i64, scratch_operands = 0 : i64, tpu.core_type = #tpu.core_type<tc>, window_params = [{transform_indices = @transform_0, window_bounds = array<i64: 16, 32>}, {pipeline_mode = #tpu.pipeline_mode<synchronous>, transform_indices = @transform_1, window_bounds = array<i64: 32, 96>}, {pipeline_mode = #tpu.pipeline_mode<synchronous>, transform_indices = @transform_2, window_bounds = array<i64: 1, 96>}, {transform_indices = @transform_3, window_bounds = array<i64: 16, 96>}]} {
    %c0 = arith.constant 0 : index
    %c0_0 = arith.constant 0 : index
    %0 = vector.load %arg1[%c0, %c0_0] : memref<16x32xbf16, #tpu.memory_space<vmem>>, vector<16x32xbf16>
    %c0_1 = arith.constant 0 : index
    %c0_2 = arith.constant 0 : index
    %1 = vector.load %arg2[%c0_1, %c0_2] : memref<32x96xbf16, #tpu.memory_space<vmem>>, vector<32x96xbf16>
    %cst = arith.constant dense<0.000000e+00> : vector<16x96xf32>
    %2 = tpu.matmul %0, %1, %cst {dimension_numbers = #tpu.dot_dimension_numbers<[1], [0], [0], [1], [0, 0, 1, 1], [], []>} : vector<16x32xbf16>, vector<32x96xbf16>, vector<16x96xf32> -> vector<16x96xf32>
    %c0_3 = arith.constant 0 : index
    %c0_4 = arith.constant 0 : index
    %3 = vector.load %arg3[%c0_3, %c0_4] : memref<1x96xf32, #tpu.memory_space<vmem>>, vector<1x96xf32>
    %4 = vector.broadcast %3 : vector<1x96xf32> to vector<16x96xf32>
    %5 = arith.addf %2, %4 : vector<16x96xf32>
    %6 = arith.truncf %5 : vector<16x96xf32> to vector<16x96xbf16>
    %c0_5 = arith.constant 0 : index
    %c0_6 = arith.constant 0 : index
    %7 = vector.load %arg4[%c0_5, %c0_6] : memref<16x96xbf16, #tpu.memory_space<vmem>>, vector<16x96xbf16>
    tpu.vector_store %arg4[%c0_5, %c0_6], %6 {strides = array<i32>} : memref<16x96xbf16, #tpu.memory_space<vmem>>, vector<16x96xbf16>,
    return
  }
  func.func @transform_0(%arg0: i32) -> (i32, i32) {
    %c0_i32 = arith.constant 0 : i32
    %c0_i32_0 = arith.constant 0 : i32
    return %arg0, %c0_i32 : i32, i32
  }
  func.func @transform_1(%arg0: i32) -> (i32, i32) {
    %c0_i32 = arith.constant 0 : i32
    %c0_i32_0 = arith.constant 0 : i32
    %c0_i32_1 = arith.constant 0 : i32
    return %c0_i32, %c0_i32_0 : i32, i32
  }
  func.func @transform_2(%arg0: i32) -> (i32, i32) {
    %c0_i32 = arith.constant 0 : i32
    %c0_i32_0 = arith.constant 0 : i32
    %c0_i32_1 = arith.constant 0 : i32
    return %c0_i32, %c0_i32_0 : i32, i32
  }
  func.func @transform_3(%arg0: i32) -> (i32, i32) {
    %c0_i32 = arith.constant 0 : i32
    %c0_i32_0 = arith.constant 0 : i32
    return %arg0, %c0_i32 : i32, i32
  }
}

module attributes {stable_mosaic.version = 11 : i64} {
  func.func @embed_ln_kernel(%arg0: i32, %arg1: memref<16x32xbf16, #tpu.memory_space<vmem>>, %arg2: memref<1x32xf32, #tpu.memory_space<vmem>>, %arg3: memref<1x32xf32, #tpu.memory_space<vmem>>, %arg4: memref<16x32xbf16, #tpu.memory_space<vmem>>) attributes {dimension_semantics = [#tpu.dimension_semantics<parallel>], iteration_bounds = array<i64: 1>, scalar_prefetch = 0 : i64, scratch_operands = 0 : i64, tpu.core_type = #tpu.core_type<tc>, window_params = [{transform_indices = @transform_0, window_bounds = array<i64: 16, 32>}, {pipeline_mode = #tpu.pipeline_mode<synchronous>, transform_indices = @transform_1, window_bounds = array<i64: 1, 32>}, {pipeline_mode = #tpu.pipeline_mode<synchronous>, transform_indices = @transform_2, window_bounds = array<i64: 1, 32>}, {transform_indices = @transform_3, window_bounds = array<i64: 16, 32>}]} {
    %c0 = arith.constant 0 : index
    %c0_0 = arith.constant 0 : index
    %0 = vector.load %arg1[%c0, %c0_0] : memref<16x32xbf16, #tpu.memory_space<vmem>>, vector<16x32xbf16>
    %1 = arith.extf %0 : vector<16x32xbf16> to vector<16x32xf32>
    %c0_1 = arith.constant 0 : index
    %c0_2 = arith.constant 0 : index
    %2 = vector.load %arg2[%c0_1, %c0_2] : memref<1x32xf32, #tpu.memory_space<vmem>>, vector<1x32xf32>
    %c0_3 = arith.constant 0 : index
    %c0_4 = arith.constant 0 : index
    %3 = vector.load %arg3[%c0_3, %c0_4] : memref<1x32xf32, #tpu.memory_space<vmem>>, vector<1x32xf32>
    %cst = arith.constant dense<0.000000e+00> : vector<16xf32>
    %4 = vector.multi_reduction <add>, %1, %cst [1] : vector<16x32xf32> to vector<16xf32>
    %5 = vector.shape_cast %4 : vector<16xf32> to vector<16x1xf32>
    %cst_5 = arith.constant 3.200000e+01 : f32
    %6 = vector.broadcast %cst_5 : f32 to vector<16x1xf32>
    %7 = arith.divf %5, %6 : vector<16x1xf32>
    %8 = vector.broadcast %7 : vector<16x1xf32> to vector<16x32xf32>
    %9 = arith.subf %1, %8 : vector<16x32xf32>
    %10 = arith.mulf %9, %9 : vector<16x32xf32>
    %cst_6 = arith.constant dense<0.000000e+00> : vector<16xf32>
    %11 = vector.multi_reduction <add>, %10, %cst_6 [1] : vector<16x32xf32> to vector<16xf32>
    %12 = vector.shape_cast %11 : vector<16xf32> to vector<16x1xf32>
    %cst_7 = arith.constant 3.200000e+01 : f32
    %13 = vector.broadcast %cst_7 : f32 to vector<16x1xf32>
    %14 = arith.divf %12, %13 : vector<16x1xf32>
    %15 = vector.broadcast %7 : vector<16x1xf32> to vector<16x32xf32>
    %16 = arith.subf %1, %15 : vector<16x32xf32>
    %cst_8 = arith.constant 9.99999996E-13 : f32
    %17 = vector.broadcast %cst_8 : f32 to vector<16x1xf32>
    %18 = arith.addf %14, %17 : vector<16x1xf32>
    %19 = math.rsqrt %18 : vector<16x1xf32>
    %20 = vector.broadcast %19 : vector<16x1xf32> to vector<16x32xf32>
    %21 = arith.mulf %16, %20 : vector<16x32xf32>
    %22 = vector.broadcast %2 : vector<1x32xf32> to vector<16x32xf32>
    %23 = arith.mulf %21, %22 : vector<16x32xf32>
    %24 = vector.broadcast %3 : vector<1x32xf32> to vector<16x32xf32>
    %25 = arith.addf %23, %24 : vector<16x32xf32>
    %26 = arith.truncf %25 : vector<16x32xf32> to vector<16x32xbf16>
    %c0_9 = arith.constant 0 : index
    %c0_10 = arith.constant 0 : index
    %27 = vector.load %arg4[%c0_9, %c0_10] : memref<16x32xbf16, #tpu.memory_space<vmem>>, vector<16x32xbf16>
    tpu.vector_store %arg4[%c0_9, %c0_10], %26 {strides = array<i32>} : memref<16x32xbf16, #tpu.memory_space<vmem>>, vector<16x32xbf16>,
    return
  }
  func.func @transform_0(%arg0: i32) -> (i32, i32) {
    %c0_i32 = arith.constant 0 : i32
    %c0_i32_0 = arith.constant 0 : i32
    return %arg0, %c0_i32 : i32, i32
  }
  func.func @transform_1(%arg0: i32) -> (i32, i32) {
    %c0_i32 = arith.constant 0 : i32
    %c0_i32_0 = arith.constant 0 : i32
    %c0_i32_1 = arith.constant 0 : i32
    return %c0_i32, %c0_i32_0 : i32, i32
  }
  func.func @transform_2(%arg0: i32) -> (i32, i32) {
    %c0_i32 = arith.constant 0 : i32
    %c0_i32_0 = arith.constant 0 : i32
    %c0_i32_1 = arith.constant 0 : i32
    return %c0_i32, %c0_i32_0 : i32, i32
  }
  func.func @transform_3(%arg0: i32) -> (i32, i32) {
    %c0_i32 = arith.constant 0 : i32
    %c0_i32_0 = arith.constant 0 : i32
    return %arg0, %c0_i32 : i32, i32
  }
}

module attributes {stable_mosaic.version = 11 : i64} {
  func.func @attn_core_kernel(%arg0: i32, %arg1: memref<1x8x96xbf16, #tpu.memory_space<vmem>>, %arg2: memref<1x8x96xbf16, #tpu.memory_space<vmem>>, %arg3: memref<1x8x96xbf16, #tpu.memory_space<vmem>>, %arg4: memref<1x1x8xf32, #tpu.memory_space<vmem>>, %arg5: memref<1x8x32xbf16, #tpu.memory_space<vmem>>) attributes {dimension_semantics = [#tpu.dimension_semantics<parallel>], iteration_bounds = array<i64: 2>, scalar_prefetch = 0 : i64, scratch_operands = 0 : i64, tpu.core_type = #tpu.core_type<tc>, window_params = [{transform_indices = @transform_0, window_bounds = array<i64: 1, 8, 96>}, {transform_indices = @transform_1, window_bounds = array<i64: 1, 8, 96>}, {transform_indices = @transform_2, window_bounds = array<i64: 1, 8, 96>}, {transform_indices = @transform_3, window_bounds = array<i64: 1, 1, 8>}, {transform_indices = @transform_4, window_bounds = array<i64: 1, 8, 32>}]} {
    %c0 = arith.constant 0 : index
    %c0_0 = arith.constant 0 : index
    %c0_1 = arith.constant 0 : index
    %0 = vector.load %arg4[%c0, %c0_0, %c0_1] : memref<1x1x8xf32, #tpu.memory_space<vmem>>, vector<1x1x8xf32>
    %1 = vector.shape_cast %0 : vector<1x1x8xf32> to vector<1x8xf32>
    %c0_2 = arith.constant 0 : index
    %c0_3 = arith.constant 0 : index
    %c0_4 = arith.constant 0 : index
    %2 = vector.load %arg1[%c0_2, %c0_3, %c0_4] : memref<1x8x96xbf16, #tpu.memory_space<vmem>>, vector<1x8x8xbf16>
    %3 = vector.shape_cast %2 : vector<1x8x8xbf16> to vector<8x8xbf16>
    %c0_5 = arith.constant 0 : index
    %c0_6 = arith.constant 0 : index
    %c32 = arith.constant 32 : index
    %4 = vector.load %arg2[%c0_5, %c0_6, %c32] : memref<1x8x96xbf16, #tpu.memory_space<vmem>>, vector<1x8x8xbf16>
    %5 = vector.shape_cast %4 : vector<1x8x8xbf16> to vector<8x8xbf16>
    %c0_7 = arith.constant 0 : index
    %c0_8 = arith.constant 0 : index
    %c64 = arith.constant 64 : index
    %6 = vector.load %arg3[%c0_7, %c0_8, %c64] : memref<1x8x96xbf16, #tpu.memory_space<vmem>>, vector<1x8x8xbf16>
    %7 = vector.shape_cast %6 : vector<1x8x8xbf16> to vector<8x8xbf16>
    %cst = arith.constant dense<0.000000e+00> : vector<8x8xf32>
    %8 = tpu.matmul %3, %5, %cst {dimension_numbers = #tpu.dot_dimension_numbers<[1], [1], [0], [0], [0, 0, 1, 0], [], []>} : vector<8x8xbf16>, vector<8x8xbf16>, vector<8x8xf32> -> vector<8x8xf32>
    %9 = vector.broadcast %1 : vector<1x8xf32> to vector<8x8xf32>
    %10 = arith.addf %8, %9 : vector<8x8xf32>
    %cst_9 = arith.constant dense<0xFF800000> : vector<8xf32>
    %11 = vector.multi_reduction <maximumf>, %10, %cst_9 [1] : vector<8x8xf32> to vector<8xf32>
    %12 = vector.shape_cast %11 : vector<8xf32> to vector<8x1xf32>
    %13 = vector.broadcast %12 : vector<8x1xf32> to vector<8x8xf32>
    %14 = arith.subf %10, %13 : vector<8x8xf32>
    %15 = math.exp %14 : vector<8x8xf32>
    %cst_10 = arith.constant dense<0.000000e+00> : vector<8xf32>
    %16 = vector.multi_reduction <add>, %15, %cst_10 [1] : vector<8x8xf32> to vector<8xf32>
    %17 = vector.shape_cast %16 : vector<8xf32> to vector<8x1xf32>
    %18 = tpu.reciprocal %17 {approx = true} : vector<8x1xf32> -> vector<8x1xf32>
    %19 = vector.broadcast %18 : vector<8x1xf32> to vector<8x8xf32>
    %20 = arith.mulf %15, %19 : vector<8x8xf32>
    %21 = arith.truncf %20 : vector<8x8xf32> to vector<8x8xbf16>
    %cst_11 = arith.constant dense<0.000000e+00> : vector<8x8xf32>
    %22 = tpu.matmul %21, %7, %cst_11 {dimension_numbers = #tpu.dot_dimension_numbers<[1], [0], [0], [1], [0, 0, 1, 1], [], []>} : vector<8x8xbf16>, vector<8x8xbf16>, vector<8x8xf32> -> vector<8x8xf32>
    %23 = arith.truncf %22 : vector<8x8xf32> to vector<8x8xbf16>
    %c0_12 = arith.constant 0 : index
    %c0_13 = arith.constant 0 : index
    %c0_14 = arith.constant 0 : index
    %24 = vector.load %arg5[%c0_12, %c0_13, %c0_14] : memref<1x8x32xbf16, #tpu.memory_space<vmem>>, vector<1x8x8xbf16>
    %25 = vector.shape_cast %24 : vector<1x8x8xbf16> to vector<8x8xbf16>
    %26 = vector.shape_cast %23 : vector<8x8xbf16> to vector<1x8x8xbf16>
    tpu.vector_store %arg5[%c0_12, %c0_13, %c0_14], %26 {strides = array<i32>} : memref<1x8x32xbf16, #tpu.memory_space<vmem>>, vector<1x8x8xbf16>,
    %c0_15 = arith.constant 0 : index
    %c0_16 = arith.constant 0 : index
    %c8 = arith.constant 8 : index
    %27 = vector.load %arg1[%c0_15, %c0_16, %c8] : memref<1x8x96xbf16, #tpu.memory_space<vmem>>, vector<1x8x8xbf16>
    %28 = vector.shape_cast %27 : vector<1x8x8xbf16> to vector<8x8xbf16>
    %c0_17 = arith.constant 0 : index
    %c0_18 = arith.constant 0 : index
    %c40 = arith.constant 40 : index
    %29 = vector.load %arg2[%c0_17, %c0_18, %c40] : memref<1x8x96xbf16, #tpu.memory_space<vmem>>, vector<1x8x8xbf16>
    %30 = vector.shape_cast %29 : vector<1x8x8xbf16> to vector<8x8xbf16>
    %c0_19 = arith.constant 0 : index
    %c0_20 = arith.constant 0 : index
    %c72 = arith.constant 72 : index
    %31 = vector.load %arg3[%c0_19, %c0_20, %c72] : memref<1x8x96xbf16, #tpu.memory_space<vmem>>, vector<1x8x8xbf16>
    %32 = vector.shape_cast %31 : vector<1x8x8xbf16> to vector<8x8xbf16>
    %cst_21 = arith.constant dense<0.000000e+00> : vector<8x8xf32>
    %33 = tpu.matmul %28, %30, %cst_21 {dimension_numbers = #tpu.dot_dimension_numbers<[1], [1], [0], [0], [0, 0, 1, 0], [], []>} : vector<8x8xbf16>, vector<8x8xbf16>, vector<8x8xf32> -> vector<8x8xf32>
    %34 = vector.broadcast %1 : vector<1x8xf32> to vector<8x8xf32>
    %35 = arith.addf %33, %34 : vector<8x8xf32>
    %cst_22 = arith.constant dense<0xFF800000> : vector<8xf32>
    %36 = vector.multi_reduction <maximumf>, %35, %cst_22 [1] : vector<8x8xf32> to vector<8xf32>
    %37 = vector.shape_cast %36 : vector<8xf32> to vector<8x1xf32>
    %38 = vector.broadcast %37 : vector<8x1xf32> to vector<8x8xf32>
    %39 = arith.subf %35, %38 : vector<8x8xf32>
    %40 = math.exp %39 : vector<8x8xf32>
    %cst_23 = arith.constant dense<0.000000e+00> : vector<8xf32>
    %41 = vector.multi_reduction <add>, %40, %cst_23 [1] : vector<8x8xf32> to vector<8xf32>
    %42 = vector.shape_cast %41 : vector<8xf32> to vector<8x1xf32>
    %43 = tpu.reciprocal %42 {approx = true} : vector<8x1xf32> -> vector<8x1xf32>
    %44 = vector.broadcast %43 : vector<8x1xf32> to vector<8x8xf32>
    %45 = arith.mulf %40, %44 : vector<8x8xf32>
    %46 = arith.truncf %45 : vector<8x8xf32> to vector<8x8xbf16>
    %cst_24 = arith.constant dense<0.000000e+00> : vector<8x8xf32>
    %47 = tpu.matmul %46, %32, %cst_24 {dimension_numbers = #tpu.dot_dimension_numbers<[1], [0], [0], [1], [0, 0, 1, 1], [], []>} : vector<8x8xbf16>, vector<8x8xbf16>, vector<8x8xf32> -> vector<8x8xf32>
    %48 = arith.truncf %47 : vector<8x8xf32> to vector<8x8xbf16>
    %c0_25 = arith.constant 0 : index
    %c0_26 = arith.constant 0 : index
    %c8_27 = arith.constant 8 : index
    %49 = vector.load %arg5[%c0_25, %c0_26, %c8_27] : memref<1x8x32xbf16, #tpu.memory_space<vmem>>, vector<1x8x8xbf16>
    %50 = vector.shape_cast %49 : vector<1x8x8xbf16> to vector<8x8xbf16>
    %51 = vector.shape_cast %48 : vector<8x8xbf16> to vector<1x8x8xbf16>
    tpu.vector_store %arg5[%c0_25, %c0_26, %c8_27], %51 {strides = array<i32>} : memref<1x8x32xbf16, #tpu.memory_space<vmem>>, vector<1x8x8xbf16>,
    %c0_28 = arith.constant 0 : index
    %c0_29 = arith.constant 0 : index
    %c16 = arith.constant 16 : index
    %52 = vector.load %arg1[%c0_28, %c0_29, %c16] : memref<1x8x96xbf16, #tpu.memory_space<vmem>>, vector<1x8x8xbf16>
    %53 = vector.shape_cast %52 : vector<1x8x8xbf16> to vector<8x8xbf16>
    %c0_30 = arith.constant 0 : index
    %c0_31 = arith.constant 0 : index
    %c48 = arith.constant 48 : index
    %54 = vector.load %arg2[%c0_30, %c0_31, %c48] : memref<1x8x96xbf16, #tpu.memory_space<vmem>>, vector<1x8x8xbf16>
    %55 = vector.shape_cast %54 : vector<1x8x8xbf16> to vector<8x8xbf16>
    %c0_32 = arith.constant 0 : index
    %c0_33 = arith.constant 0 : index
    %c80 = arith.constant 80 : index
    %56 = vector.load %arg3[%c0_32, %c0_33, %c80] : memref<1x8x96xbf16, #tpu.memory_space<vmem>>, vector<1x8x8xbf16>
    %57 = vector.shape_cast %56 : vector<1x8x8xbf16> to vector<8x8xbf16>
    %cst_34 = arith.constant dense<0.000000e+00> : vector<8x8xf32>
    %58 = tpu.matmul %53, %55, %cst_34 {dimension_numbers = #tpu.dot_dimension_numbers<[1], [1], [0], [0], [0, 0, 1, 0], [], []>} : vector<8x8xbf16>, vector<8x8xbf16>, vector<8x8xf32> -> vector<8x8xf32>
    %59 = vector.broadcast %1 : vector<1x8xf32> to vector<8x8xf32>
    %60 = arith.addf %58, %59 : vector<8x8xf32>
    %cst_35 = arith.constant dense<0xFF800000> : vector<8xf32>
    %61 = vector.multi_reduction <maximumf>, %60, %cst_35 [1] : vector<8x8xf32> to vector<8xf32>
    %62 = vector.shape_cast %61 : vector<8xf32> to vector<8x1xf32>
    %63 = vector.broadcast %62 : vector<8x1xf32> to vector<8x8xf32>
    %64 = arith.subf %60, %63 : vector<8x8xf32>
    %65 = math.exp %64 : vector<8x8xf32>
    %cst_36 = arith.constant dense<0.000000e+00> : vector<8xf32>
    %66 = vector.multi_reduction <add>, %65, %cst_36 [1] : vector<8x8xf32> to vector<8xf32>
    %67 = vector.shape_cast %66 : vector<8xf32> to vector<8x1xf32>
    %68 = tpu.reciprocal %67 {approx = true} : vector<8x1xf32> -> vector<8x1xf32>
    %69 = vector.broadcast %68 : vector<8x1xf32> to vector<8x8xf32>
    %70 = arith.mulf %65, %69 : vector<8x8xf32>
    %71 = arith.truncf %70 : vector<8x8xf32> to vector<8x8xbf16>
    %cst_37 = arith.constant dense<0.000000e+00> : vector<8x8xf32>
    %72 = tpu.matmul %71, %57, %cst_37 {dimension_numbers = #tpu.dot_dimension_numbers<[1], [0], [0], [1], [0, 0, 1, 1], [], []>} : vector<8x8xbf16>, vector<8x8xbf16>, vector<8x8xf32> -> vector<8x8xf32>
    %73 = arith.truncf %72 : vector<8x8xf32> to vector<8x8xbf16>
    %c0_38 = arith.constant 0 : index
    %c0_39 = arith.constant 0 : index
    %c16_40 = arith.constant 16 : index
    %74 = vector.load %arg5[%c0_38, %c0_39, %c16_40] : memref<1x8x32xbf16, #tpu.memory_space<vmem>>, vector<1x8x8xbf16>
    %75 = vector.shape_cast %74 : vector<1x8x8xbf16> to vector<8x8xbf16>
    %76 = vector.shape_cast %73 : vector<8x8xbf16> to vector<1x8x8xbf16>
    tpu.vector_store %arg5[%c0_38, %c0_39, %c16_40], %76 {strides = array<i32>} : memref<1x8x32xbf16, #tpu.memory_space<vmem>>, vector<1x8x8xbf16>,
    %c0_41 = arith.constant 0 : index
    %c0_42 = arith.constant 0 : index
    %c24 = arith.constant 24 : index
    %77 = vector.load %arg1[%c0_41, %c0_42, %c24] : memref<1x8x96xbf16, #tpu.memory_space<vmem>>, vector<1x8x8xbf16>
    %78 = vector.shape_cast %77 : vector<1x8x8xbf16> to vector<8x8xbf16>
    %c0_43 = arith.constant 0 : index
    %c0_44 = arith.constant 0 : index
    %c56 = arith.constant 56 : index
    %79 = vector.load %arg2[%c0_43, %c0_44, %c56] : memref<1x8x96xbf16, #tpu.memory_space<vmem>>, vector<1x8x8xbf16>
    %80 = vector.shape_cast %79 : vector<1x8x8xbf16> to vector<8x8xbf16>
    %c0_45 = arith.constant 0 : index
    %c0_46 = arith.constant 0 : index
    %c88 = arith.constant 88 : index
    %81 = vector.load %arg3[%c0_45, %c0_46, %c88] : memref<1x8x96xbf16, #tpu.memory_space<vmem>>, vector<1x8x8xbf16>
    %82 = vector.shape_cast %81 : vector<1x8x8xbf16> to vector<8x8xbf16>
    %cst_47 = arith.constant dense<0.000000e+00> : vector<8x8xf32>
    %83 = tpu.matmul %78, %80, %cst_47 {dimension_numbers = #tpu.dot_dimension_numbers<[1], [1], [0], [0], [0, 0, 1, 0], [], []>} : vector<8x8xbf16>, vector<8x8xbf16>, vector<8x8xf32> -> vector<8x8xf32>
    %84 = vector.broadcast %1 : vector<1x8xf32> to vector<8x8xf32>
    %85 = arith.addf %83, %84 : vector<8x8xf32>
    %cst_48 = arith.constant dense<0xFF800000> : vector<8xf32>
    %86 = vector.multi_reduction <maximumf>, %85, %cst_48 [1] : vector<8x8xf32> to vector<8xf32>
    %87 = vector.shape_cast %86 : vector<8xf32> to vector<8x1xf32>
    %88 = vector.broadcast %87 : vector<8x1xf32> to vector<8x8xf32>
    %89 = arith.subf %85, %88 : vector<8x8xf32>
    %90 = math.exp %89 : vector<8x8xf32>
    %cst_49 = arith.constant dense<0.000000e+00> : vector<8xf32>
    %91 = vector.multi_reduction <add>, %90, %cst_49 [1] : vector<8x8xf32> to vector<8xf32>
    %92 = vector.shape_cast %91 : vector<8xf32> to vector<8x1xf32>
    %93 = tpu.reciprocal %92 {approx = true} : vector<8x1xf32> -> vector<8x1xf32>
    %94 = vector.broadcast %93 : vector<8x1xf32> to vector<8x8xf32>
    %95 = arith.mulf %90, %94 : vector<8x8xf32>
    %96 = arith.truncf %95 : vector<8x8xf32> to vector<8x8xbf16>
    %cst_50 = arith.constant dense<0.000000e+00> : vector<8x8xf32>
    %97 = tpu.matmul %96, %82, %cst_50 {dimension_numbers = #tpu.dot_dimension_numbers<[1], [0], [0], [1], [0, 0, 1, 1], [], []>} : vector<8x8xbf16>, vector<8x8xbf16>, vector<8x8xf32> -> vector<8x8xf32>
    %98 = arith.truncf %97 : vector<8x8xf32> to vector<8x8xbf16>
    %c0_51 = arith.constant 0 : index
    %c0_52 = arith.constant 0 : index
    %c24_53 = arith.constant 24 : index
    %99 = vector.load %arg5[%c0_51, %c0_52, %c24_53] : memref<1x8x32xbf16, #tpu.memory_space<vmem>>, vector<1x8x8xbf16>
    %100 = vector.shape_cast %99 : vector<1x8x8xbf16> to vector<8x8xbf16>
    %101 = vector.shape_cast %98 : vector<8x8xbf16> to vector<1x8x8xbf16>
    tpu.vector_store %arg5[%c0_51, %c0_52, %c24_53], %101 {strides = array<i32>} : memref<1x8x32xbf16, #tpu.memory_space<vmem>>, vector<1x8x8xbf16>,
    return
  }
  func.func @transform_0(%arg0: i32) -> (i32, i32, i32) {
    %c0_i32 = arith.constant 0 : i32
    %c0_i32_0 = arith.constant 0 : i32
    %c0_i32_1 = arith.constant 0 : i32
    return %arg0, %c0_i32, %c0_i32_0 : i32, i32, i32
  }
  func.func @transform_1(%arg0: i32) -> (i32, i32, i32) {
    %c0_i32 = arith.constant 0 : i32
    %c0_i32_0 = arith.constant 0 : i32
    %c0_i32_1 = arith.constant 0 : i32
    return %arg0, %c0_i32, %c0_i32_0 : i32, i32, i32
  }
  func.func @transform_2(%arg0: i32) -> (i32, i32, i32) {
    %c0_i32 = arith.constant 0 : i32
    %c0_i32_0 = arith.constant 0 : i32
    %c0_i32_1 = arith.constant 0 : i32
    return %arg0, %c0_i32, %c0_i32_0 : i32, i32, i32
  }
  func.func @transform_3(%arg0: i32) -> (i32, i32, i32) {
    %c0_i32 = arith.constant 0 : i32
    %c0_i32_0 = arith.constant 0 : i32
    %c0_i32_1 = arith.constant 0 : i32
    return %arg0, %c0_i32, %c0_i32_0 : i32, i32, i32
  }
  func.func @transform_4(%arg0: i32) -> (i32, i32, i32) {
    %c0_i32 = arith.constant 0 : i32
    %c0_i32_0 = arith.constant 0 : i32
    %c0_i32_1 = arith.constant 0 : i32
    return %arg0, %c0_i32, %c0_i32_0 : i32, i32, i32
  }
}

module attributes {stable_mosaic.version = 11 : i64} {
  func.func @dense_res_ln_kernel(%arg0: i32, %arg1: memref<16x32xbf16, #tpu.memory_space<vmem>>, %arg2: memref<16x32xbf16, #tpu.memory_space<vmem>>, %arg3: memref<32x32xbf16, #tpu.memory_space<vmem>>, %arg4: memref<1x32xf32, #tpu.memory_space<vmem>>, %arg5: memref<1x32xf32, #tpu.memory_space<vmem>>, %arg6: memref<1x32xf32, #tpu.memory_space<vmem>>, %arg7: memref<16x32xbf16, #tpu.memory_space<vmem>>) attributes {dimension_semantics = [#tpu.dimension_semantics<parallel>], iteration_bounds = array<i64: 1>, scalar_prefetch = 0 : i64, scratch_operands = 0 : i64, tpu.core_type = #tpu.core_type<tc>, window_params = [{transform_indices = @transform_0, window_bounds = array<i64: 16, 32>}, {transform_indices = @transform_1, window_bounds = array<i64: 16, 32>}, {pipeline_mode = #tpu.pipeline_mode<synchronous>, transform_indices = @transform_2, window_bounds = array<i64: 32, 32>}, {pipeline_mode = #tpu.pipeline_mode<synchronous>, transform_indices = @transform_3, window_bounds = array<i64: 1, 32>}, {pipeline_mode = #tpu.pipeline_mode<synchronous>, transform_indices = @transform_4, window_bounds = array<i64: 1, 32>}, {pipeline_mode = #tpu.pipeline_mode<synchronous>, transform_indices = @transform_5, window_bounds = array<i64: 1, 32>}, {transform_indices = @transform_6, window_bounds = array<i64: 16, 32>}]} {
    %c0 = arith.constant 0 : index
    %c0_0 = arith.constant 0 : index
    %0 = vector.load %arg1[%c0, %c0_0] : memref<16x32xbf16, #tpu.memory_space<vmem>>, vector<16x32xbf16>
    %c0_1 = arith.constant 0 : index
    %c0_2 = arith.constant 0 : index
    %1 = vector.load %arg3[%c0_1, %c0_2] : memref<32x32xbf16, #tpu.memory_space<vmem>>, vector<32x32xbf16>
    %cst = arith.constant dense<0.000000e+00> : vector<16x32xf32>
    %2 = tpu.matmul %0, %1, %cst {dimension_numbers = #tpu.dot_dimension_numbers<[1], [0], [0], [1], [0, 0, 1, 1], [], []>} : vector<16x32xbf16>, vector<32x32xbf16>, vector<16x32xf32> -> vector<16x32xf32>
    %c0_3 = arith.constant 0 : index
    %c0_4 = arith.constant 0 : index
    %3 = vector.load %arg4[%c0_3, %c0_4] : memref<1x32xf32, #tpu.memory_space<vmem>>, vector<1x32xf32>
    %4 = vector.broadcast %3 : vector<1x32xf32> to vector<16x32xf32>
    %5 = arith.addf %2, %4 : vector<16x32xf32>
    %c0_5 = arith.constant 0 : index
    %c0_6 = arith.constant 0 : index
    %6 = vector.load %arg2[%c0_5, %c0_6] : memref<16x32xbf16, #tpu.memory_space<vmem>>, vector<16x32xbf16>
    %7 = arith.extf %6 : vector<16x32xbf16> to vector<16x32xf32>
    %8 = arith.addf %5, %7 : vector<16x32xf32>
    %c0_7 = arith.constant 0 : index
    %c0_8 = arith.constant 0 : index
    %9 = vector.load %arg5[%c0_7, %c0_8] : memref<1x32xf32, #tpu.memory_space<vmem>>, vector<1x32xf32>
    %c0_9 = arith.constant 0 : index
    %c0_10 = arith.constant 0 : index
    %10 = vector.load %arg6[%c0_9, %c0_10] : memref<1x32xf32, #tpu.memory_space<vmem>>, vector<1x32xf32>
    %cst_11 = arith.constant dense<0.000000e+00> : vector<16xf32>
    %11 = vector.multi_reduction <add>, %8, %cst_11 [1] : vector<16x32xf32> to vector<16xf32>
    %12 = vector.shape_cast %11 : vector<16xf32> to vector<16x1xf32>
    %cst_12 = arith.constant 3.200000e+01 : f32
    %13 = vector.broadcast %cst_12 : f32 to vector<16x1xf32>
    %14 = arith.divf %12, %13 : vector<16x1xf32>
    %15 = vector.broadcast %14 : vector<16x1xf32> to vector<16x32xf32>
    %16 = arith.subf %8, %15 : vector<16x32xf32>
    %17 = arith.mulf %16, %16 : vector<16x32xf32>
    %cst_13 = arith.constant dense<0.000000e+00> : vector<16xf32>
    %18 = vector.multi_reduction <add>, %17, %cst_13 [1] : vector<16x32xf32> to vector<16xf32>
    %19 = vector.shape_cast %18 : vector<16xf32> to vector<16x1xf32>
    %cst_14 = arith.constant 3.200000e+01 : f32
    %20 = vector.broadcast %cst_14 : f32 to vector<16x1xf32>
    %21 = arith.divf %19, %20 : vector<16x1xf32>
    %22 = vector.broadcast %14 : vector<16x1xf32> to vector<16x32xf32>
    %23 = arith.subf %8, %22 : vector<16x32xf32>
    %cst_15 = arith.constant 9.99999996E-13 : f32
    %24 = vector.broadcast %cst_15 : f32 to vector<16x1xf32>
    %25 = arith.addf %21, %24 : vector<16x1xf32>
    %26 = math.rsqrt %25 : vector<16x1xf32>
    %27 = vector.broadcast %26 : vector<16x1xf32> to vector<16x32xf32>
    %28 = arith.mulf %23, %27 : vector<16x32xf32>
    %29 = vector.broadcast %9 : vector<1x32xf32> to vector<16x32xf32>
    %30 = arith.mulf %28, %29 : vector<16x32xf32>
    %31 = vector.broadcast %10 : vector<1x32xf32> to vector<16x32xf32>
    %32 = arith.addf %30, %31 : vector<16x32xf32>
    %33 = arith.truncf %32 : vector<16x32xf32> to vector<16x32xbf16>
    %c0_16 = arith.constant 0 : index
    %c0_17 = arith.constant 0 : index
    %34 = vector.load %arg7[%c0_16, %c0_17] : memref<16x32xbf16, #tpu.memory_space<vmem>>, vector<16x32xbf16>
    tpu.vector_store %arg7[%c0_16, %c0_17], %33 {strides = array<i32>} : memref<16x32xbf16, #tpu.memory_space<vmem>>, vector<16x32xbf16>,
    return
  }
  func.func @transform_0(%arg0: i32) -> (i32, i32) {
    %c0_i32 = arith.constant 0 : i32
    %c0_i32_0 = arith.constant 0 : i32
    return %arg0, %c0_i32 : i32, i32
  }
  func.func @transform_1(%arg0: i32) -> (i32, i32) {
    %c0_i32 = arith.constant 0 : i32
    %c0_i32_0 = arith.constant 0 : i32
    return %arg0, %c0_i32 : i32, i32
  }
  func.func @transform_2(%arg0: i32) -> (i32, i32) {
    %c0_i32 = arith.constant 0 : i32
    %c0_i32_0 = arith.constant 0 : i32
    %c0_i32_1 = arith.constant 0 : i32
    return %c0_i32, %c0_i32_0 : i32, i32
  }
  func.func @transform_3(%arg0: i32) -> (i32, i32) {
    %c0_i32 = arith.constant 0 : i32
    %c0_i32_0 = arith.constant 0 : i32
    %c0_i32_1 = arith.constant 0 : i32
    return %c0_i32, %c0_i32_0 : i32, i32
  }
  func.func @transform_4(%arg0: i32) -> (i32, i32) {
    %c0_i32 = arith.constant 0 : i32
    %c0_i32_0 = arith.constant 0 : i32
    %c0_i32_1 = arith.constant 0 : i32
    return %c0_i32, %c0_i32_0 : i32, i32
  }
  func.func @transform_5(%arg0: i32) -> (i32, i32) {
    %c0_i32 = arith.constant 0 : i32
    %c0_i32_0 = arith.constant 0 : i32
    %c0_i32_1 = arith.constant 0 : i32
    return %c0_i32, %c0_i32_0 : i32, i32
  }
  func.func @transform_6(%arg0: i32) -> (i32, i32) {
    %c0_i32 = arith.constant 0 : i32
    %c0_i32_0 = arith.constant 0 : i32
    return %arg0, %c0_i32 : i32, i32
  }
}

module attributes {stable_mosaic.version = 11 : i64} {
  func.func @ffn_kernel(%arg0: i32, %arg1: i32, %arg2: memref<16x32xbf16, #tpu.memory_space<vmem>>, %arg3: memref<32x64xbf16, #tpu.memory_space<vmem>>, %arg4: memref<1x64xf32, #tpu.memory_space<vmem>>, %arg5: memref<64x32xbf16, #tpu.memory_space<vmem>>, %arg6: memref<1x32xf32, #tpu.memory_space<vmem>>, %arg7: memref<1x32xf32, #tpu.memory_space<vmem>>, %arg8: memref<1x32xf32, #tpu.memory_space<vmem>>, %arg9: memref<16x32xbf16, #tpu.memory_space<vmem>>, %arg10: memref<16x32xf32, #tpu.memory_space<vmem>>) attributes {dimension_semantics = [#tpu.dimension_semantics<parallel>, #tpu.dimension_semantics<arbitrary>], iteration_bounds = array<i64: 1, 1>, scalar_prefetch = 0 : i64, scratch_operands = 1 : i64, tpu.core_type = #tpu.core_type<tc>, window_params = [{transform_indices = @transform_0, window_bounds = array<i64: 16, 32>}, {transform_indices = @transform_1, window_bounds = array<i64: 32, 64>}, {transform_indices = @transform_2, window_bounds = array<i64: 1, 64>}, {transform_indices = @transform_3, window_bounds = array<i64: 64, 32>}, {pipeline_mode = #tpu.pipeline_mode<synchronous>, transform_indices = @transform_4, window_bounds = array<i64: 1, 32>}, {pipeline_mode = #tpu.pipeline_mode<synchronous>, transform_indices = @transform_5, window_bounds = array<i64: 1, 32>}, {pipeline_mode = #tpu.pipeline_mode<synchronous>, transform_indices = @transform_6, window_bounds = array<i64: 1, 32>}, {transform_indices = @transform_7, window_bounds = array<i64: 16, 32>}]} {
    %c0_i32 = arith.constant 0 : i32
    %0 = arith.cmpi eq, %arg1, %c0_i32 : i32
    %1 = arith.extui %0 : i1 to i32
    %c0_i32_0 = arith.constant 0 : i32
    %2 = arith.cmpi ne, %1, %c0_i32_0 : i32
    scf.if %2 {
      %cst_30 = arith.constant 0.000000e+00 : f32
      %58 = vector.broadcast %cst_30 : f32 to vector<16x32xf32>
      %c0_31 = arith.constant 0 : index
      %c0_32 = arith.constant 0 : index
      %59 = vector.load %arg10[%c0_31, %c0_32] : memref<16x32xf32, #tpu.memory_space<vmem>>, vector<16x32xf32>
      tpu.vector_store %arg10[%c0_31, %c0_32], %58 {strides = array<i32>} : memref<16x32xf32, #tpu.memory_space<vmem>>, vector<16x32xf32>,
    } else {
    }
    %c0 = arith.constant 0 : index
    %c0_1 = arith.constant 0 : index
    %3 = vector.load %arg2[%c0, %c0_1] : memref<16x32xbf16, #tpu.memory_space<vmem>>, vector<16x32xbf16>
    %c0_2 = arith.constant 0 : index
    %c0_3 = arith.constant 0 : index
    %4 = vector.load %arg3[%c0_2, %c0_3] : memref<32x64xbf16, #tpu.memory_space<vmem>>, vector<32x64xbf16>
    %cst = arith.constant dense<0.000000e+00> : vector<16x64xf32>
    %5 = tpu.matmul %3, %4, %cst {dimension_numbers = #tpu.dot_dimension_numbers<[1], [0], [0], [1], [0, 0, 1, 1], [], []>} : vector<16x32xbf16>, vector<32x64xbf16>, vector<16x64xf32> -> vector<16x64xf32>
    %c0_4 = arith.constant 0 : index
    %c0_5 = arith.constant 0 : index
    %6 = vector.load %arg4[%c0_4, %c0_5] : memref<1x64xf32, #tpu.memory_space<vmem>>, vector<1x64xf32>
    %7 = vector.broadcast %6 : vector<1x64xf32> to vector<16x64xf32>
    %8 = arith.addf %5, %7 : vector<16x64xf32>
    %cst_6 = arith.constant 5.000000e-01 : f32
    %9 = vector.broadcast %cst_6 : f32 to vector<16x64xf32>
    %10 = arith.mulf %9, %8 : vector<16x64xf32>
    %cst_7 = arith.constant 0.707106769 : f32
    %11 = vector.broadcast %cst_7 : f32 to vector<16x64xf32>
    %12 = arith.mulf %8, %11 : vector<16x64xf32>
    %cst_8 = arith.constant 0.000000e+00 : f32
    %13 = vector.broadcast %cst_8 : f32 to vector<16x64xf32>
    %14 = arith.cmpf oge, %12, %13 : vector<16x64xf32>
    %cst_9 = arith.constant 1.000000e+00 : f32
    %cst_10 = arith.constant -1.000000e+00 : f32
    %15 = vector.broadcast %cst_9 : f32 to vector<16x64xf32>
    %16 = vector.broadcast %cst_10 : f32 to vector<16x64xf32>
    %17 = arith.select %14, %15, %16 : vector<16x64xi1>, vector<16x64xf32>
    %18 = math.absf %12 : vector<16x64xf32>
    %cst_11 = arith.constant 0.327591091 : f32
    %19 = vector.broadcast %cst_11 : f32 to vector<16x64xf32>
    %20 = arith.mulf %19, %18 : vector<16x64xf32>
    %cst_12 = arith.constant 1.000000e+00 : f32
    %21 = vector.broadcast %cst_12 : f32 to vector<16x64xf32>
    %22 = arith.addf %21, %20 : vector<16x64xf32>
    %23 = tpu.reciprocal %22 {approx = true} : vector<16x64xf32> -> vector<16x64xf32>
    %cst_13 = arith.constant 1.06140542 : f32
    %24 = vector.broadcast %cst_13 : f32 to vector<16x64xf32>
    %25 = arith.mulf %24, %23 : vector<16x64xf32>
    %cst_14 = arith.constant -1.45315206 : f32
    %26 = vector.broadcast %cst_14 : f32 to vector<16x64xf32>
    %27 = arith.addf %25, %26 : vector<16x64xf32>
    %28 = arith.mulf %27, %23 : vector<16x64xf32>
    %cst_15 = arith.constant 1.42141378 : f32
    %29 = vector.broadcast %cst_15 : f32 to vector<16x64xf32>
    %30 = arith.addf %28, %29 : vector<16x64xf32>
    %31 = arith.mulf %30, %23 : vector<16x64xf32>
    %cst_16 = arith.constant -0.284496725 : f32
    %32 = vector.broadcast %cst_16 : f32 to vector<16x64xf32>
    %33 = arith.addf %31, %32 : vector<16x64xf32>
    %34 = arith.mulf %33, %23 : vector<16x64xf32>
    %cst_17 = arith.constant 0.254829586 : f32
    %35 = vector.broadcast %cst_17 : f32 to vector<16x64xf32>
    %36 = arith.addf %34, %35 : vector<16x64xf32>
    %37 = arith.mulf %36, %23 : vector<16x64xf32>
    %cst_18 = arith.constant 0.000000e+00 : f32
    %38 = vector.broadcast %cst_18 : f32 to vector<16x64xf32>
    %39 = arith.subf %38, %18 : vector<16x64xf32>
    %40 = arith.mulf %39, %18 : vector<16x64xf32>
    %41 = math.exp %40 : vector<16x64xf32>
    %42 = arith.mulf %37, %41 : vector<16x64xf32>
    %cst_19 = arith.constant 1.000000e+00 : f32
    %43 = vector.broadcast %cst_19 : f32 to vector<16x64xf32>
    %44 = arith.subf %43, %42 : vector<16x64xf32>
    %45 = arith.mulf %17, %44 : vector<16x64xf32>
    %cst_20 = arith.constant 1.000000e+00 : f32
    %46 = vector.broadcast %cst_20 : f32 to vector<16x64xf32>
    %47 = arith.addf %46, %45 : vector<16x64xf32>
    %48 = arith.mulf %10, %47 : vector<16x64xf32>
    %c0_21 = arith.constant 0 : index
    %c0_22 = arith.constant 0 : index
    %49 = vector.load %arg10[%c0_21, %c0_22] : memref<16x32xf32, #tpu.memory_space<vmem>>, vector<16x32xf32>
    %50 = arith.truncf %48 : vector<16x64xf32> to vector<16x64xbf16>
    %c0_23 = arith.constant 0 : index
    %c0_24 = arith.constant 0 : index
    %51 = vector.load %arg5[%c0_23, %c0_24] : memref<64x32xbf16, #tpu.memory_space<vmem>>, vector<64x32xbf16>
    %cst_25 = arith.constant dense<0.000000e+00> : vector<16x32xf32>
    %52 = tpu.matmul %50, %51, %cst_25 {dimension_numbers = #tpu.dot_dimension_numbers<[1], [0], [0], [1], [0, 0, 1, 1], [], []>} : vector<16x64xbf16>, vector<64x32xbf16>, vector<16x32xf32> -> vector<16x32xf32>
    %53 = arith.addf %49, %52 : vector<16x32xf32>
    %c0_26 = arith.constant 0 : index
    %c0_27 = arith.constant 0 : index
    %54 = vector.load %arg10[%c0_26, %c0_27] : memref<16x32xf32, #tpu.memory_space<vmem>>, vector<16x32xf32>
    tpu.vector_store %arg10[%c0_26, %c0_27], %53 {strides = array<i32>} : memref<16x32xf32, #tpu.memory_space<vmem>>, vector<16x32xf32>,
    %c0_i32_28 = arith.constant 0 : i32
    %55 = arith.cmpi eq, %arg1, %c0_i32_28 : i32
    %56 = arith.extui %55 : i1 to i32
    %c0_i32_29 = arith.constant 0 : i32
    %57 = arith.cmpi ne, %56, %c0_i32_29 : i32
    scf.if %57 {
      %c0_30 = arith.constant 0 : index
      %c0_31 = arith.constant 0 : index
      %58 = vector.load %arg10[%c0_30, %c0_31] : memref<16x32xf32, #tpu.memory_space<vmem>>, vector<16x32xf32>
      %c0_32 = arith.constant 0 : index
      %c0_33 = arith.constant 0 : index
      %59 = vector.load %arg6[%c0_32, %c0_33] : memref<1x32xf32, #tpu.memory_space<vmem>>, vector<1x32xf32>
      %60 = vector.broadcast %59 : vector<1x32xf32> to vector<16x32xf32>
      %61 = arith.addf %58, %60 : vector<16x32xf32>
      %c0_34 = arith.constant 0 : index
      %c0_35 = arith.constant 0 : index
      %62 = vector.load %arg2[%c0_34, %c0_35] : memref<16x32xbf16, #tpu.memory_space<vmem>>, vector<16x32xbf16>
      %63 = arith.extf %62 : vector<16x32xbf16> to vector<16x32xf32>
      %64 = arith.addf %61, %63 : vector<16x32xf32>
      %c0_36 = arith.constant 0 : index
      %c0_37 = arith.constant 0 : index
      %65 = vector.load %arg7[%c0_36, %c0_37] : memref<1x32xf32, #tpu.memory_space<vmem>>, vector<1x32xf32>
      %c0_38 = arith.constant 0 : index
      %c0_39 = arith.constant 0 : index
      %66 = vector.load %arg8[%c0_38, %c0_39] : memref<1x32xf32, #tpu.memory_space<vmem>>, vector<1x32xf32>
      %cst_40 = arith.constant dense<0.000000e+00> : vector<16xf32>
      %67 = vector.multi_reduction <add>, %64, %cst_40 [1] : vector<16x32xf32> to vector<16xf32>
      %68 = vector.shape_cast %67 : vector<16xf32> to vector<16x1xf32>
      %cst_41 = arith.constant 3.200000e+01 : f32
      %69 = vector.broadcast %cst_41 : f32 to vector<16x1xf32>
      %70 = arith.divf %68, %69 : vector<16x1xf32>
      %71 = vector.broadcast %70 : vector<16x1xf32> to vector<16x32xf32>
      %72 = arith.subf %64, %71 : vector<16x32xf32>
      %73 = arith.mulf %72, %72 : vector<16x32xf32>
      %cst_42 = arith.constant dense<0.000000e+00> : vector<16xf32>
      %74 = vector.multi_reduction <add>, %73, %cst_42 [1] : vector<16x32xf32> to vector<16xf32>
      %75 = vector.shape_cast %74 : vector<16xf32> to vector<16x1xf32>
      %cst_43 = arith.constant 3.200000e+01 : f32
      %76 = vector.broadcast %cst_43 : f32 to vector<16x1xf32>
      %77 = arith.divf %75, %76 : vector<16x1xf32>
      %78 = vector.broadcast %70 : vector<16x1xf32> to vector<16x32xf32>
      %79 = arith.subf %64, %78 : vector<16x32xf32>
      %cst_44 = arith.constant 9.99999996E-13 : f32
      %80 = vector.broadcast %cst_44 : f32 to vector<16x1xf32>
      %81 = arith.addf %77, %80 : vector<16x1xf32>
      %82 = math.rsqrt %81 : vector<16x1xf32>
      %83 = vector.broadcast %82 : vector<16x1xf32> to vector<16x32xf32>
      %84 = arith.mulf %79, %83 : vector<16x32xf32>
      %85 = vector.broadcast %65 : vector<1x32xf32> to vector<16x32xf32>
      %86 = arith.mulf %84, %85 : vector<16x32xf32>
      %87 = vector.broadcast %66 : vector<1x32xf32> to vector<16x32xf32>
      %88 = arith.addf %86, %87 : vector<16x32xf32>
      %89 = arith.truncf %88 : vector<16x32xf32> to vector<16x32xbf16>
      %c0_45 = arith.constant 0 : index
      %c0_46 = arith.constant 0 : index
      %90 = vector.load %arg9[%c0_45, %c0_46] : memref<16x32xbf16, #tpu.memory_space<vmem>>, vector<16x32xbf16>
      tpu.vector_store %arg9[%c0_45, %c0_46], %89 {strides = array<i32>} : memref<16x32xbf16, #tpu.memory_space<vmem>>, vector<16x32xbf16>,
    } else {
    }
    return
  }
  func.func @transform_0(%arg0: i32, %arg1: i32) -> (i32, i32) {
    %c0_i32 = arith.constant 0 : i32
    %c0_i32_0 = arith.constant 0 : i32
    return %arg0, %c0_i32 : i32, i32
  }
  func.func @transform_1(%arg0: i32, %arg1: i32) -> (i32, i32) {
    %c0_i32 = arith.constant 0 : i32
    %c0_i32_0 = arith.constant 0 : i32
    return %c0_i32, %arg1 : i32, i32
  }
  func.func @transform_2(%arg0: i32, %arg1: i32) -> (i32, i32) {
    %c0_i32 = arith.constant 0 : i32
    %c0_i32_0 = arith.constant 0 : i32
    return %c0_i32, %arg1 : i32, i32
  }
  func.func @transform_3(%arg0: i32, %arg1: i32) -> (i32, i32) {
    %c0_i32 = arith.constant 0 : i32
    %c0_i32_0 = arith.constant 0 : i32
    return %arg1, %c0_i32 : i32, i32
  }
  func.func @transform_4(%arg0: i32, %arg1: i32) -> (i32, i32) {
    %c0_i32 = arith.constant 0 : i32
    %c0_i32_0 = arith.constant 0 : i32
    %c0_i32_1 = arith.constant 0 : i32
    return %c0_i32, %c0_i32_0 : i32, i32
  }
  func.func @transform_5(%arg0: i32, %arg1: i32) -> (i32, i32) {
    %c0_i32 = arith.constant 0 : i32
    %c0_i32_0 = arith.constant 0 : i32
    %c0_i32_1 = arith.constant 0 : i32
    return %c0_i32, %c0_i32_0 : i32, i32
  }
  func.func @transform_6(%arg0: i32, %arg1: i32) -> (i32, i32) {
    %c0_i32 = arith.constant 0 : i32
    %c0_i32_0 = arith.constant 0 : i32
    %c0_i32_1 = arith.constant 0 : i32
    return %c0_i32, %c0_i32_0 : i32, i32
  }
  func.func @transform_7(%arg0: i32, %arg1: i32) -> (i32, i32) {
    %c0_i32 = arith.constant 0 : i32
    %c0_i32_0 = arith.constant 0 : i32
    return %arg0, %c0_i32 : i32, i32
  }
}

module attributes {stable_mosaic.version = 11 : i64} {
  func.func @pooler_kernel(%arg0: i32, %arg1: memref<2x32xbf16, #tpu.memory_space<vmem>>, %arg2: memref<32x32xbf16, #tpu.memory_space<vmem>>, %arg3: memref<1x32xf32, #tpu.memory_space<vmem>>, %arg4: memref<32x3xbf16, #tpu.memory_space<vmem>>, %arg5: memref<1x3xf32, #tpu.memory_space<vmem>>, %arg6: memref<2x3xf32, #tpu.memory_space<vmem>>) attributes {dimension_semantics = [#tpu.dimension_semantics<arbitrary>], iteration_bounds = array<i64: 1>, scalar_prefetch = 0 : i64, scratch_operands = 0 : i64, tpu.core_type = #tpu.core_type<tc>, window_params = [{pipeline_mode = #tpu.pipeline_mode<synchronous>, transform_indices = @transform_0, window_bounds = array<i64: 2, 32>}, {pipeline_mode = #tpu.pipeline_mode<synchronous>, transform_indices = @transform_1, window_bounds = array<i64: 32, 32>}, {pipeline_mode = #tpu.pipeline_mode<synchronous>, transform_indices = @transform_2, window_bounds = array<i64: 1, 32>}, {pipeline_mode = #tpu.pipeline_mode<synchronous>, transform_indices = @transform_3, window_bounds = array<i64: 32, 3>}, {pipeline_mode = #tpu.pipeline_mode<synchronous>, transform_indices = @transform_4, window_bounds = array<i64: 1, 3>}, {pipeline_mode = #tpu.pipeline_mode<synchronous>, transform_indices = @transform_5, window_bounds = array<i64: 2, 3>}]} {
    %c0 = arith.constant 0 : index
    %c0_0 = arith.constant 0 : index
    %0 = vector.load %arg1[%c0, %c0_0] : memref<2x32xbf16, #tpu.memory_space<vmem>>, vector<2x32xbf16>
    %c0_1 = arith.constant 0 : index
    %c0_2 = arith.constant 0 : index
    %1 = vector.load %arg2[%c0_1, %c0_2] : memref<32x32xbf16, #tpu.memory_space<vmem>>, vector<32x32xbf16>
    %cst = arith.constant dense<0.000000e+00> : vector<2x32xf32>
    %2 = tpu.matmul %0, %1, %cst {dimension_numbers = #tpu.dot_dimension_numbers<[1], [0], [0], [1], [0, 0, 1, 1], [], []>} : vector<2x32xbf16>, vector<32x32xbf16>, vector<2x32xf32> -> vector<2x32xf32>
    %c0_3 = arith.constant 0 : index
    %c0_4 = arith.constant 0 : index
    %3 = vector.load %arg3[%c0_3, %c0_4] : memref<1x32xf32, #tpu.memory_space<vmem>>, vector<1x32xf32>
    %4 = vector.broadcast %3 : vector<1x32xf32> to vector<2x32xf32>
    %5 = arith.addf %2, %4 : vector<2x32xf32>
    %6 = math.tanh %5 : vector<2x32xf32>
    %7 = arith.truncf %6 : vector<2x32xf32> to vector<2x32xbf16>
    %c0_5 = arith.constant 0 : index
    %c0_6 = arith.constant 0 : index
    %8 = vector.load %arg4[%c0_5, %c0_6] : memref<32x3xbf16, #tpu.memory_space<vmem>>, vector<32x3xbf16>
    %cst_7 = arith.constant dense<0.000000e+00> : vector<2x3xf32>
    %9 = tpu.matmul %7, %8, %cst_7 {dimension_numbers = #tpu.dot_dimension_numbers<[1], [0], [0], [1], [0, 0, 1, 1], [], []>} : vector<2x32xbf16>, vector<32x3xbf16>, vector<2x3xf32> -> vector<2x3xf32>
    %c0_8 = arith.constant 0 : index
    %c0_9 = arith.constant 0 : index
    %10 = vector.load %arg5[%c0_8, %c0_9] : memref<1x3xf32, #tpu.memory_space<vmem>>, vector<1x3xf32>
    %11 = vector.broadcast %10 : vector<1x3xf32> to vector<2x3xf32>
    %12 = arith.addf %9, %11 : vector<2x3xf32>
    %c0_10 = arith.constant 0 : index
    %c0_11 = arith.constant 0 : index
    %13 = vector.load %arg6[%c0_10, %c0_11] : memref<2x3xf32, #tpu.memory_space<vmem>>, vector<2x3xf32>
    tpu.vector_store %arg6[%c0_10, %c0_11], %12 {strides = array<i32>} : memref<2x3xf32, #tpu.memory_space<vmem>>, vector<2x3xf32>,
    return
  }
  func.func @transform_0(%arg0: i32) -> (i32, i32) {
    %c0_i32 = arith.constant 0 : i32
    %c0_i32_0 = arith.constant 0 : i32
    %c0_i32_1 = arith.constant 0 : i32
    return %c0_i32, %c0_i32_0 : i32, i32
  }
  func.func @transform_1(%arg0: i32) -> (i32, i32) {
    %c0_i32 = arith.constant 0 : i32
    %c0_i32_0 = arith.constant 0 : i32
    %c0_i32_1 = arith.constant 0 : i32
    return %c0_i32, %c0_i32_0 : i32, i32
  }
  func.func @transform_2(%arg0: i32) -> (i32, i32) {
    %c0_i32 = arith.constant 0 : i32
    %c0_i32_0 = arith.constant 0 : i32
    %c0_i32_1 = arith.constant 0 : i32
    return %c0_i32, %c0_i32_0 : i32, i32
  }
  func.func @transform_3(%arg0: i32) -> (i32, i32) {
    %c0_i32 = arith.constant 0 : i32
    %c0_i32_0 = arith.constant 0 : i32
    %c0_i32_1 = arith.constant 0 : i32
    return %c0_i32, %c0_i32_0 : i32, i32
  }
  func.func @transform_4(%arg0: i32) -> (i32, i32) {
    %c0_i32 = arith.constant 0 : i32
    %c0_i32_0 = arith.constant 0 : i32
    %c0_i32_1 = arith.constant 0 : i32
    return %c0_i32, %c0_i32_0 : i32, i32
  }
  func.func @transform_5(%arg0: i32) -> (i32, i32) {
    %c0_i32 = arith.constant 0 : i32
    %c0_i32_0 = arith.constant 0 : i32
    %c0_i32_1 = arith.constant 0 : i32
    return %c0_i32, %c0_i32_0 : i32, i32
  }
}

</mosaic_0001>

<llo_original>
// kernel: sentiment_forward.11
$region0: #{sentiment_forward.11}
  #allocation0 [shape = 'u32[]', space=smem, size = 0x4, offset = 0x4, fixed_abs, tag = 'smem constant byte address 0x4 - core index']
  #allocation1 [shape = 'u32[144,128]{1,0:T(1,128)}', space=vmem, size = 0x12000, scoped, tag = 'internal scratch']
  %s0 = inlined_call_operand.vmem [shape: bf16[16,32], index: 0, kind: input, shape index: {}]
  %s1 = inlined_call_operand.vmem [shape: bf16[32,96], index: 1, kind: input, shape index: {}]
  %s2 = inlined_call_operand.vmem [shape: f32[1,96], index: 2, kind: input, shape index: {}]
  %s3 = inlined_call_operand.vmem [shape: bf16[16,96], index: 3, kind: output, shape index: {}]
  %s4 = sld [smem:[#allocation0]]
  $region22: #{sentiment_forward.11} parent=0
    _
  %s6 = ssub.s32 1, %s4
  %s7 = scalar_select 0, %s6, %s4
  // Predicated region
  $region2: #{sentiment_forward.11} parent=0 // pred_check
    _
  $region3: #{sentiment_forward.11} parent=0 // pred_check_branch
    %9 = sbr.rel (0) target = $region5
  $region4: #{sentiment_forward.11} parent=0 // pred_region
    _
  $region5: #{sentiment_forward.11} parent=0 // pred_fallthru
    _
  // Predicated region
  $region6: #{sentiment_forward.11} parent=0 // pred_check
    _
  $region7: #{sentiment_forward.11} parent=0 // pred_check_branch
    %11 = sbr.rel (0) target = $region9
  $region8: #{sentiment_forward.11} parent=0 // pred_region
    _
  $region9: #{sentiment_forward.11} parent=0 // pred_fallthru
    _
  // Predicated region
  $region10: #{sentiment_forward.11} parent=0 // pred_check
    _
  $region11: #{sentiment_forward.11} parent=0 // pred_check_branch
    %13 = sbr.rel (0) target = $region13
  $region12: #{sentiment_forward.11} parent=0 // pred_region
    _
  $region13: #{sentiment_forward.11} parent=0 // pred_fallthru
    _
  %v15 = vld [vmem:[%s0] sm:$0xf]
  %v16 = vld [vmem:[%s0 + $0x4] sm:$0xf]
  %v17 = vld [vmem:[%s1] sm:$0xf]
  %v18 = vld [vmem:[%s1 + $0x4] sm:$0xf]
  %v19 = vld [vmem:[%s1 + $0x8] sm:$0xf]
  %v20 = vld [vmem:[%s1 + $0xc] sm:$0xf]
  %v21 = vld [vmem:[%s2] sm:$0x1]
  %v23 = vlaneseq
  %v24 = vshrl.u32 %v23, 7
  %v25 = vsub.s32 0, %v24
  %v26 = vrot.slane %v21, %v25
  %v30 = vunpack.c.l.b16 %v15
  %v31 = vunpack.c.l.b16 %v16
  %v32 = vpack.c.b16 %v31, %v30
  %v37 = vunpack.c.l.b16 %v17
  %v38 = vunpack.c.l.b16 %v18
  %v39 = vunpack.c.l.b16 %v19
  %v40 = vunpack.c.l.b16 %v20
  %v41 = vpack.c.b16 %v38, %v37
  %v42 = vpack.c.b16 %v40, %v39
  %vm45 = vcmask 261120
  %v47 = vsel %vm45, %v32, 0
  %49 = vmatprep.subr.bf16.mxu0 0
  %50 = vmatpush1.bf16.msra.mxu0 0
  %51 = vmatprep.subr.bf16.mxu0 0
  %52 = vmatpush1.bf16.msra.mxu0 0
  %53 = vmatprep.subr.bf16.mxu0 0
  %54 = vmatpush1.bf16.msra.mxu0 0
  %55 = vmatprep.subr.bf16.mxu0 0
  %56 = vmatpush1.bf16.msra.mxu0 0
  %57 = vmatprep.subr.bf16.mxu0 0
  %58 = vmatpush1.bf16.msra.mxu0 0
  %59 = vmatprep.subr.bf16.mxu0 0
  %60 = vmatpush1.bf16.msra.mxu0 0
  %61 = vmatprep.subr.bf16.mxu0 0
  %62 = vmatpush1.bf16.msra.mxu0 %v42
  %63 = vmatprep.subr.bf16.mxu0 0
  %64 = vmatpush1.bf16.msra.mxu0 %v41
  %65 = vmatprep.subr.bf16.mxu0 0
  %66 = vmatpush2.bf16.msra.mxu0 0
  %67 = vmatprep.subr.bf16.mxu0 0
  %68 = vmatpush2.bf16.msra.mxu0 0
  %69 = vmatprep.subr.bf16.mxu0 0
  %70 = vmatpush2.bf16.msra.mxu0 0
  %71 = vmatprep.subr.bf16.mxu0 0
  %72 = vmatpush2.bf16.msra.mxu0 0
  %73 = vmatprep.subr.bf16.mxu0 0
  %74 = vmatpush2.bf16.msra.mxu0 0
  %75 = vmatprep.subr.bf16.mxu0 0
  %76 = vmatpush2.bf16.msra.mxu0 0
  %77 = vmatprep.subr.bf16.mxu0 0
  %78 = vmatpush2.bf16.msra.mxu0 0
  %79 = vmatprep.subr.bf16.mxu0 0
  %80 = vmatpush2.bf16.msra.mxu0 0
  %81 = vmatprep.mubr.bf16.mxu0 0
  %82 = vmatmul.mubr.bf16.gmra.mxu0 %v47
  %v83 = vpop.f32.mrf.mxu0
  %v84 = vadd.f32 %v26, %v83
  %v85 = vpop.f32.mrf.mxu0
  %v86 = vpop.f32.mrf.mxu0
  %v87 = vadd.f32 %v26, %v86
  %v88 = vpop.f32.mrf.mxu0
  %89 = vdwg.mxu0
  %v90 = vpack.c.bf16 %v87, %v84
  %v92 = vunpack.c.l.b16 %v90
  %v93 = vunpack.c.h.b16 %v90
  %v94 = vpack.c.b16 %v92, %v92
  %v95 = vpack.c.b16 %v93, %v93
  %vm98 = vcmask 781312
  %99 = vst.msk [vmem:[%s3] sm:$0xf] %vm98, %v94
  %100 = vst.msk [vmem:[%s3 + $0x4] sm:$0xf] %vm98, %v95
  // Predicated region
  $region14: #{sentiment_forward.11} parent=0 // pred_check
    _
  $region15: #{sentiment_forward.11} parent=0 // pred_check_branch
    %102 = sbr.rel (0) target = $region17
  $region16: #{sentiment_forward.11} parent=0 // pred_region
    _
  $region17: #{sentiment_forward.11} parent=0 // pred_fallthru
    _
  // Predicated region
  $region18: #{sentiment_forward.11} parent=0 // pred_check
    _
  $region19: #{sentiment_forward.11} parent=0 // pred_check_branch
    %104 = sbr.rel (0) target = $region21
  $region20: #{sentiment_forward.11} parent=0 // pred_region
    _
  $region21: #{sentiment_forward.11} parent=0 // pred_fallthru
    _

// kernel: sentiment_forward.10
$region0: #{sentiment_forward.10}
  #allocation0 [shape = 'u32[]', space=smem, size = 0x4, offset = 0x4, fixed_abs, tag = 'smem constant byte address 0x4 - core index']
  #allocation1 [shape = 'u32[144,128]{1,0:T(1,128)}', space=vmem, size = 0x12000, scoped, tag = 'internal scratch']
  %s0 = inlined_call_operand.vmem [shape: bf16[16,32], index: 0, kind: input, shape index: {}]
  %s1 = inlined_call_operand.vmem [shape: f32[1,32], index: 1, kind: input, shape index: {}]
  %s2 = inlined_call_operand.vmem [shape: f32[1,32], index: 2, kind: input, shape index: {}]
  %s3 = inlined_call_operand.vmem [shape: bf16[16,32], index: 3, kind: output, shape index: {}]
  %s4 = sld [smem:[#allocation0]]
  $region22: #{sentiment_forward.10} parent=0
    _
  %s6 = ssub.s32 1, %s4
  %s7 = scalar_select 0, %s6, %s4
  // Predicated region
  $region2: #{sentiment_forward.10} parent=0 // pred_check
    _
  $region3: #{sentiment_forward.10} parent=0 // pred_check_branch
    %9 = sbr.rel (0) target = $region5
  $region4: #{sentiment_forward.10} parent=0 // pred_region
    _
  $region5: #{sentiment_forward.10} parent=0 // pred_fallthru
    _
  // Predicated region
  $region6: #{sentiment_forward.10} parent=0 // pred_check
    _
  $region7: #{sentiment_forward.10} parent=0 // pred_check_branch
    %11 = sbr.rel (0) target = $region9
  $region8: #{sentiment_forward.10} parent=0 // pred_region
    _
  $region9: #{sentiment_forward.10} parent=0 // pred_fallthru
    _
  // Predicated region
  $region10: #{sentiment_forward.10} parent=0 // pred_check
    _
  $region11: #{sentiment_forward.10} parent=0 // pred_check_branch
    %13 = sbr.rel (0) target = $region13
  $region12: #{sentiment_forward.10} parent=0 // pred_region
    _
  $region13: #{sentiment_forward.10} parent=0 // pred_fallthru
    _
  %v14 = vld [vmem:[%s0] sm:$0xf]
  %v15 = vld [vmem:[%s0 + $0x4] sm:$0xf]
  %v16 = vunpack.c.l.bf16 %v14
  %v17 = vunpack.c.l.bf16 %v15
  %v18 = vld [vmem:[%s1] sm:$0x1]
  %v19 = vld [vmem:[%s2] sm:$0x1]
  %vm20 = vcmask 261120
  %v21 = vsel %vm20, %v16, 0.0
  %22 = vadd.xlane.f32.xlu0 %v21
  %v23 = vpop.xlane.xlu0 %22
  %v24 = vsel %vm20, %v17, 0.0
  %25 = vadd.xlane.f32.xlu0 %v24
  %v26 = vpop.xlane.xlu0 %25
  %v27 = vrcp.pop 32.0
  %v28 = vmul.f32 %v23, %v27
  %v29 = vmul.f32 %v26, %v27
  %v30 = vsub.f32 %v16, %v28
  %v31 = vsub.f32 %v17, %v29
  %v32 = vmul.f32 %v30, %v30
  %v33 = vmul.f32 %v31, %v31
  %v34 = vsel %vm20, %v32, 0.0
  %35 = vadd.xlane.f32.xlu0 %v34
  %v36 = vpop.xlane.xlu0 %35
  %v37 = vsel %vm20, %v33, 0.0
  %38 = vadd.xlane.f32.xlu0 %v37
  %v39 = vpop.xlane.xlu0 %38
  %v40 = vmul.f32 %v36, %v27
  %v41 = vmul.f32 %v39, %v27
  %v42 = vadd.f32 %v40, 1e-12
  %v43 = vadd.f32 %v41, 1e-12
  %v44 = vrsqrt.pop %v42
  %v45 = vrsqrt.pop %v43
  %v46 = vmul.f32 %v30, %v44
  %v47 = vmul.f32 %v31, %v45
  %v49 = vlaneseq
  %v50 = vshrl.u32 %v49, 7
  %v51 = vsub.s32 0, %v50
  %v52 = vrot.slane %v18, %v51
  %v54 = vmul.f32 %v46, %v52
  %v55 = vmul.f32 %v47, %v52
  %v57 = vlaneseq
  %v58 = vshrl.u32 %v57, 7
  %v59 = vsub.s32 0, %v58
  %v60 = vrot.slane %v19, %v59
  %v62 = vadd.f32 %v54, %v60
  %v63 = vadd.f32 %v55, %v60
  %v64 = vpack.c.bf16 %v63, %v62
  %v66 = vunpack.c.l.b16 %v64
  %v67 = vunpack.c.h.b16 %v64
  %v68 = vpack.c.b16 %v66, %v66
  %v69 = vpack.c.b16 %v67, %v67
  %vm72 = vcmask 257024
  %73 = vst.msk [vmem:[%s3] sm:$0xf] %vm72, %v68
  %74 = vst.msk [vmem:[%s3 + $0x4] sm:$0xf] %vm72, %v69
  // Predicated region
  $region14: #{sentiment_forward.10} parent=0 // pred_check
    _
  $region15: #{sentiment_forward.10} parent=0 // pred_check_branch
    %76 = sbr.rel (0) target = $region17
  $region16: #{sentiment_forward.10} parent=0 // pred_region
    _
  $region17: #{sentiment_forward.10} parent=0 // pred_fallthru
    _
  // Predicated region
  $region18: #{sentiment_forward.10} parent=0 // pred_check
    _
  $region19: #{sentiment_forward.10} parent=0 // pred_check_branch
    %78 = sbr.rel (0) target = $region21
  $region20: #{sentiment_forward.10} parent=0 // pred_region
    _
  $region21: #{sentiment_forward.10} parent=0 // pred_fallthru
    _

// kernel: sentiment_forward.13
$region0: #{sentiment_forward.13}
  #allocation0 [shape = 'u32[]', space=smem, size = 0x4, offset = 0x4, fixed_abs, tag = 'smem constant byte address 0x4 - core index']
  #allocation1 [shape = 'u32[144,128]{1,0:T(1,128)}', space=vmem, size = 0x12000, scoped, tag = 'internal scratch']
  %s0 = inlined_call_operand.vmem [shape: bf16[16,32], index: 0, kind: input, shape index: {}]
  %s1 = inlined_call_operand.vmem [shape: bf16[16,32], index: 1, kind: input, shape index: {}]
  %s2 = inlined_call_operand.vmem [shape: bf16[32,32], index: 2, kind: input, shape index: {}]
  %s3 = inlined_call_operand.vmem [shape: f32[1,32], index: 3, kind: input, shape index: {}]
  %s4 = inlined_call_operand.vmem [shape: f32[1,32], index: 4, kind: input, shape index: {}]
  %s5 = inlined_call_operand.vmem [shape: f32[1,32], index: 5, kind: input, shape index: {}]
  %s6 = inlined_call_operand.vmem [shape: bf16[16,32], index: 6, kind: output, shape index: {}]
  %s7 = sld [smem:[#allocation0]]
  $region34: #{sentiment_forward.13} parent=0
    _
  %s9 = ssub.s32 1, %s7
  %s10 = scalar_select 0, %s9, %s7
  // Predicated region
  $region2: #{sentiment_forward.13} parent=0 // pred_check
    _
  $region3: #{sentiment_forward.13} parent=0 // pred_check_branch
    %12 = sbr.rel (0) target = $region5
  $region4: #{sentiment_forward.13} parent=0 // pred_region
    _
  $region5: #{sentiment_forward.13} parent=0 // pred_fallthru
    _
  // Predicated region
  $region6: #{sentiment_forward.13} parent=0 // pred_check
    _
  $region7: #{sentiment_forward.13} parent=0 // pred_check_branch
    %14 = sbr.rel (0) target = $region9
  $region8: #{sentiment_forward.13} parent=0 // pred_region
    _
  $region9: #{sentiment_forward.13} parent=0 // pred_fallthru
    _
  // Predicated region
  $region10: #{sentiment_forward.13} parent=0 // pred_check
    _
  $region11: #{sentiment_forward.13} parent=0 // pred_check_branch
    %16 = sbr.rel (0) target = $region13
  $region12: #{sentiment_forward.13} parent=0 // pred_region
    _
  $region13: #{sentiment_forward.13} parent=0 // pred_fallthru
    _
  // Predicated region
  $region14: #{sentiment_forward.13} parent=0 // pred_check
    _
  $region15: #{sentiment_forward.13} parent=0 // pred_check_branch
    %18 = sbr.rel (0) target = $region17
  $region16: #{sentiment_forward.13} parent=0 // pred_region
    _
  $region17: #{sentiment_forward.13} parent=0 // pred_fallthru
    _
  // Predicated region
  $region18: #{sentiment_forward.13} parent=0 // pred_check
    _
  $region19: #{sentiment_forward.13} parent=0 // pred_check_branch
    %20 = sbr.rel (0) target = $region21
  $region20: #{sentiment_forward.13} parent=0 // pred_region
    _
  $region21: #{sentiment_forward.13} parent=0 // pred_fallthru
    _
  // Predicated region
  $region22: #{sentiment_forward.13} parent=0 // pred_check
    _
  $region23: #{sentiment_forward.13} parent=0 // pred_check_branch
    %22 = sbr.rel (0) target = $region25
  $region24: #{sentiment_forward.13} parent=0 // pred_region
    _
  $region25: #{sentiment_forward.13} parent=0 // pred_fallthru
    _
  %v24 = vld [vmem:[%s0] sm:$0xf]
  %v25 = vld [vmem:[%s0 + $0x4] sm:$0xf]
  %v26 = vld [vmem:[%s2] sm:$0xf]
  %v27 = vld [vmem:[%s2 + $0x4] sm:$0xf]
  %v28 = vld [vmem:[%s2 + $0x8] sm:$0xf]
  %v29 = vld [vmem:[%s2 + $0xc] sm:$0xf]
  %v30 = vld [vmem:[%s3] sm:$0x1]
  %v32 = vlaneseq
  %v33 = vshrl.u32 %v32, 7
  %v34 = vsub.s32 0, %v33
  %v35 = vrot.slane %v30, %v34
  %v39 = vunpack.c.l.b16 %v24
  %v40 = vunpack.c.l.b16 %v25
  %v41 = vpack.c.b16 %v40, %v39
  %v46 = vunpack.c.l.b16 %v26
  %v47 = vunpack.c.l.b16 %v27
  %v48 = vunpack.c.l.b16 %v28
  %v49 = vunpack.c.l.b16 %v29
  %v50 = vpack.c.b16 %v47, %v46
  %v51 = vpack.c.b16 %v49, %v48
  %vm54 = vcmask 261120
  %v56 = vsel %vm54, %v41, 0
  %58 = vmatprep.subr.bf16.mxu0 0
  %59 = vmatpush1.bf16.msra.mxu0 0
  %60 = vmatprep.subr.bf16.mxu0 0
  %61 = vmatpush1.bf16.msra.mxu0 0
  %62 = vmatprep.subr.bf16.mxu0 0
  %63 = vmatpush1.bf16.msra.mxu0 0
  %64 = vmatprep.subr.bf16.mxu0 0
  %65 = vmatpush1.bf16.msra.mxu0 0
  %66 = vmatprep.subr.bf16.mxu0 0
  %67 = vmatpush1.bf16.msra.mxu0 0
  %68 = vmatprep.subr.bf16.mxu0 0
  %69 = vmatpush1.bf16.msra.mxu0 0
  %70 = vmatprep.subr.bf16.mxu0 0
  %71 = vmatpush1.bf16.msra.mxu0 %v51
  %72 = vmatprep.subr.bf16.mxu0 0
  %73 = vmatpush1.bf16.msra.mxu0 %v50
  %74 = vmatprep.subr.bf16.mxu0 0
  %75 = vmatpush2.bf16.msra.mxu0 0
  %76 = vmatprep.subr.bf16.mxu0 0
  %77 = vmatpush2.bf16.msra.mxu0 0
  %78 = vmatprep.subr.bf16.mxu0 0
  %79 = vmatpush2.bf16.msra.mxu0 0
  %80 = vmatprep.subr.bf16.mxu0 0
  %81 = vmatpush2.bf16.msra.mxu0 0
  %82 = vmatprep.subr.bf16.mxu0 0
  %83 = vmatpush2.bf16.msra.mxu0 0
  %84 = vmatprep.subr.bf16.mxu0 0
  %85 = vmatpush2.bf16.msra.mxu0 0
  %86 = vmatprep.subr.bf16.mxu0 0
  %87 = vmatpush2.bf16.msra.mxu0 0
  %88 = vmatprep.subr.bf16.mxu0 0
  %89 = vmatpush2.bf16.msra.mxu0 0
  %90 = vmatprep.mubr.bf16.mxu0 0
  %91 = vmatmul.mubr.bf16.gmra.mxu0 %v56
  %v92 = vpop.f32.mrf.mxu0
  %v93 = vadd.f32 %v35, %v92
  %v94 = vpop.f32.mrf.mxu0
  %v95 = vpop.f32.mrf.mxu0
  %v96 = vadd.f32 %v35, %v95
  %v97 = vpop.f32.mrf.mxu0
  %98 = vdwg.mxu0
  %v99 = vld [vmem:[%s1] sm:$0xf]
  %v100 = vld [vmem:[%s1 + $0x4] sm:$0xf]
  %v101 = vunpack.c.l.bf16 %v99
  %v102 = vunpack.c.l.bf16 %v100
  %v103 = vadd.f32 %v93, %v101
  %v104 = vadd.f32 %v96, %v102
  %v105 = vld [vmem:[%s4] sm:$0x1]
  %v106 = vld [vmem:[%s5] sm:$0x1]
  %v107 = vsel %vm54, %v103, 0.0
  %108 = vadd.xlane.f32.xlu0 %v107
  %v109 = vpop.xlane.xlu0 %108
  %v110 = vsel %vm54, %v104, 0.0
  %111 = vadd.xlane.f32.xlu0 %v110
  %v112 = vpop.xlane.xlu0 %111
  %v113 = vrcp.pop 32.0
  %v114 = vmul.f32 %v109, %v113
  %v115 = vmul.f32 %v112, %v113
  %v116 = vsub.f32 %v103, %v114
  %v117 = vsub.f32 %v104, %v115
  %v118 = vmul.f32 %v116, %v116
  %v119 = vmul.f32 %v117, %v117
  %v120 = vsel %vm54, %v118, 0.0
  %121 = vadd.xlane.f32.xlu0 %v120
  %v122 = vpop.xlane.xlu0 %121
  %v123 = vsel %vm54, %v119, 0.0
  %124 = vadd.xlane.f32.xlu0 %v123
  %v125 = vpop.xlane.xlu0 %124
  %v126 = vmul.f32 %v122, %v113
  %v127 = vmul.f32 %v125, %v113
  %v128 = vadd.f32 %v126, 1e-12
  %v129 = vadd.f32 %v127, 1e-12
  %v130 = vrsqrt.pop %v128
  %v131 = vrsqrt.pop %v129
  %v132 = vmul.f32 %v116, %v130
  %v133 = vmul.f32 %v117, %v131
  %v135 = vlaneseq
  %v136 = vshrl.u32 %v135, 7
  %v137 = vsub.s32 0, %v136
  %v138 = vrot.slane %v105, %v137
  %v140 = vmul.f32 %v132, %v138
  %v141 = vmul.f32 %v133, %v138
  %v143 = vlaneseq
  %v144 = vshrl.u32 %v143, 7
  %v145 = vsub.s32 0, %v144
  %v146 = vrot.slane %v106, %v145
  %v148 = vadd.f32 %v140, %v146
  %v149 = vadd.f32 %v141, %v146
  %v150 = vpack.c.bf16 %v149, %v148
  %v152 = vunpack.c.l.b16 %v150
  %v153 = vunpack.c.h.b16 %v150
  %v154 = vpack.c.b16 %v152, %v152
  %v155 = vpack.c.b16 %v153, %v153
  %vm158 = vcmask 257024
  %159 = vst.msk [vmem:[%s6] sm:$0xf] %vm158, %v154
  %160 = vst.msk [vmem:[%s6 + $0x4] sm:$0xf] %vm158, %v155
  // Predicated region
  $region26: #{sentiment_forward.13} parent=0 // pred_check
    _
  $region27: #{sentiment_forward.13} parent=0 // pred_check_branch
    %162 = sbr.rel (0) target = $region29
  $region28: #{sentiment_forward.13} parent=0 // pred_region
    _
  $region29: #{sentiment_forward.13} parent=0 // pred_fallthru
    _
  // Predicated region
  $region30: #{sentiment_forward.13} parent=0 // pred_check
    _
  $region31: #{sentiment_forward.13} parent=0 // pred_check_branch
    %164 = sbr.rel (0) target = $region33
  $region32: #{sentiment_forward.13} parent=0 // pred_region
    _
  $region33: #{sentiment_forward.13} parent=0 // pred_fallthru
    _

// kernel: sentiment_forward.12
$region0: #{sentiment_forward.12}
  #allocation0 [shape = 'u32[]', space=smem, size = 0x4, offset = 0x4, fixed_abs, tag = 'smem constant byte address 0x4 - core index']
  #allocation1 [shape = 'u32[144,128]{1,0:T(1,128)}', space=vmem, size = 0x12000, scoped, tag = 'internal scratch']
  %s0 = inlined_call_operand.vmem [shape: bf16[2,8,96], index: 0, kind: input, shape index: {}, may-alias: {0,1,2}]
  %s1 = inlined_call_operand.vmem [shape: bf16[2,8,96], index: 1, kind: input, shape index: {}, may-alias: {0,1,2}]
  %s2 = inlined_call_operand.vmem [shape: bf16[2,8,96], index: 2, kind: input, shape index: {}, may-alias: {0,1,2}]
  %s3 = inlined_call_operand.vmem [shape: f32[2,1,8], index: 3, kind: input, shape index: {}]
  %s4 = inlined_call_operand.vmem [shape: bf16[2,8,32], index: 4, kind: output, shape index: {}]
  %s5 = sld [smem:[#allocation0]]
  $region49: #{sentiment_forward.12} parent=0
    _
  %s7 = ssub.s32 1, %s5
  %s8 = scalar_select 0, %s7, %s5
  loop: start=0, step=1, limit=4
  $region2: #{sentiment_forward.12} parent=0 // loop_pre_header
    _
  $region3: #{sentiment_forward.12} parent=0 // loop_header
    %s10 = sphi 0, %s14
    %p11 = scmp.ge.s32.totalorder %s10, 4
    %s20 = sphi 0, %s22
    %s23 = sphi 0, %s20
    %s24 = sphi 0, %s23
    %s40 = sphi 0, %s24
    %s46 = sphi 0, %s48
    %s49 = sphi 0, %s46
    %s50 = sphi 0, %s49
    %s66 = sphi 0, %s50
    %s72 = sphi 0, %s74
    %s75 = sphi 0, %s72
    %s76 = sphi 0, %s75
    %s92 = sphi 0, %s76
    %s98 = sphi 0, %s100
    %s101 = sphi 0, %s98
    %s102 = sphi 0, %s101
    %s118 = sphi 0, %s102
    %s124 = sphi 0, %s126
    %s127 = sphi 0, %s124
    %s128 = sphi 0, %s127
    %s144 = sphi 0, %s128
  $region4: #{sentiment_forward.12} parent=0 // loop_header_branch
    %13 = sbr.rel (%p11) target = $region8
  $region5: #{sentiment_forward.12} parent=0 // loop_body
    %s15 = ssub.s32 %s10, 1
    %s16 = ssub.s32 %s10, 2
    %s17 = sadd.s32 %s10, 1
    %s18 = ssub.s32 %s10, %s17
    %p19 = scmp.eq.s32.totalorder %s18, 0
    %s21 = sadd.s32 %s20, 1
    %s22 = scalar_select %p19, %s20, %s21
    %p25 = pneg %p19
    %p26 = scmp.eq.s32.totalorder %s10, 1
    %p27 = por %p25, %p26
    %p28 = scmp.ne.s32.totalorder %s20, %s23
    %p29 = scmp.eq.s32.totalorder %s10, 0
    %p30 = por %p28, %p29
    %p31 = scmp.ne.s32.totalorder %s20, %s23
    %p32 = scmp.eq.s32.totalorder %s15, 1
    %p33 = por %p31, %p32
    %p34 = scmp.ne.s32.totalorder %s23, %s24
    %p35 = scmp.eq.s32.totalorder %s15, 0
    %p36 = por %p34, %p35
    %p37 = scmp.ne.s32.totalorder %s23, %s24
    %p38 = scmp.eq.s32.totalorder %s16, 1
    %p39 = por %p37, %p38
    %p41 = scmp.ne.s32.totalorder %s24, %s40
    %p42 = scmp.eq.s32.totalorder %s16, 0
    %p43 = por %p41, %p42
    %s44 = ssub.s32 %s10, %s17
    %p45 = scmp.eq.s32.totalorder %s44, 0
    %s47 = sadd.s32 %s46, 1
    %s48 = scalar_select %p45, %s46, %s47
    %p51 = pneg %p45
    %p52 = scmp.eq.s32.totalorder %s10, 1
    %p53 = por %p51, %p52
    %p54 = scmp.ne.s32.totalorder %s46, %s49
    %p55 = scmp.eq.s32.totalorder %s10, 0
    %p56 = por %p54, %p55
    %p57 = scmp.ne.s32.totalorder %s46, %s49
    %p58 = scmp.eq.s32.totalorder %s15, 1
    %p59 = por %p57, %p58
    %p60 = scmp.ne.s32.totalorder %s49, %s50
    %p61 = scmp.eq.s32.totalorder %s15, 0
    %p62 = por %p60, %p61
    %p63 = scmp.ne.s32.totalorder %s49, %s50
    %p64 = scmp.eq.s32.totalorder %s16, 1
    %p65 = por %p63, %p64
    %p67 = scmp.ne.s32.totalorder %s50, %s66
    %p68 = scmp.eq.s32.totalorder %s16, 0
    %p69 = por %p67, %p68
    %s70 = ssub.s32 %s10, %s17
    %p71 = scmp.eq.s32.totalorder %s70, 0
    %s73 = sadd.s32 %s72, 1
    %s74 = scalar_select %p71, %s72, %s73
    %p77 = pneg %p71
    %p78 = scmp.eq.s32.totalorder %s10, 1
    %p79 = por %p77, %p78
    %p80 = scmp.ne.s32.totalorder %s72, %s75
    %p81 = scmp.eq.s32.totalorder %s10, 0
    %p82 = por %p80, %p81
    %p83 = scmp.ne.s32.totalorder %s72, %s75
    %p84 = scmp.eq.s32.totalorder %s15, 1
    %p85 = por %p83, %p84
    %p86 = scmp.ne.s32.totalorder %s75, %s76
    %p87 = scmp.eq.s32.totalorder %s15, 0
    %p88 = por %p86, %p87
    %p89 = scmp.ne.s32.totalorder %s75, %s76
    %p90 = scmp.eq.s32.totalorder %s16, 1
    %p91 = por %p89, %p90
    %p93 = scmp.ne.s32.totalorder %s76, %s92
    %p94 = scmp.eq.s32.totalorder %s16, 0
    %p95 = por %p93, %p94
    %s96 = ssub.s32 %s10, %s17
    %p97 = scmp.eq.s32.totalorder %s96, 0
    %s99 = sadd.s32 %s98, 1
    %s100 = scalar_select %p97, %s98, %s99
    %p103 = pneg %p97
    %p104 = scmp.eq.s32.totalorder %s10, 1
    %p105 = por %p103, %p104
    %p106 = scmp.ne.s32.totalorder %s98, %s101
    %p107 = scmp.eq.s32.totalorder %s10, 0
    %p108 = por %p106, %p107
    %p109 = scmp.ne.s32.totalorder %s98, %s101
    %p110 = scmp.eq.s32.totalorder %s15, 1
    %p111 = por %p109, %p110
    %p112 = scmp.ne.s32.totalorder %s101, %s102
    %p113 = scmp.eq.s32.totalorder %s15, 0
    %p114 = por %p112, %p113
    %p115 = scmp.ne.s32.totalorder %s101, %s102
    %p116 = scmp.eq.s32.totalorder %s16, 1
    %p117 = por %p115, %p116
    %p119 = scmp.ne.s32.totalorder %s102, %s118
    %p120 = scmp.eq.s32.totalorder %s16, 0
    %p121 = por %p119, %p120
    %s122 = ssub.s32 %s10, %s17
    %p123 = scmp.eq.s32.totalorder %s122, 0
    %s125 = sadd.s32 %s124, 1
    %s126 = scalar_select %p123, %s124, %s125
    %p129 = pneg %p123
    %p130 = scmp.eq.s32.totalorder %s10, 1
    %p131 = por %p129, %p130
    %p132 = scmp.ne.s32.totalorder %s124, %s127
    %p133 = scmp.eq.s32.totalorder %s10, 0
    %p134 = por %p132, %p133
    %p135 = scmp.ne.s32.totalorder %s124, %s127
    %p136 = scmp.eq.s32.totalorder %s15, 1
    %p137 = por %p135, %p136
    %p138 = scmp.ne.s32.totalorder %s127, %s128
    %p139 = scmp.eq.s32.totalorder %s15, 0
    %p140 = por %p138, %p139
    %p141 = scmp.ne.s32.totalorder %s127, %s128
    %p142 = scmp.eq.s32.totalorder %s16, 1
    %p143 = por %p141, %p142
    %p145 = scmp.ne.s32.totalorder %s128, %s144
    %p146 = scmp.eq.s32.totalorder %s16, 0
    %p147 = por %p145, %p146
    %p148 = scmp.le.s32.totalorder 1, %s10
    %p149 = scmp.lt.s32.totalorder %s10, 3
    %p150 = pnand %p148, %p149
    %p151 = pneg %p150
    // Predicated region
    $region9: #{sentiment_forward.12} parent=5 // pred_check
      _
    $region10: #{sentiment_forward.12} parent=5 // pred_check_branch
      %153 = sbr.rel (%p150) target = $region12
    $region11: #{sentiment_forward.12} parent=5 // pred_region
      %s154 = ssub.s32 %s10, 1
    $region12: #{sentiment_forward.12} parent=5 // pred_fallthru
      _
    %p155 = scmp.lt.s32.totalorder %s10, 2
    // Predicated region
    $region13: #{sentiment_forward.12} parent=5 // pred_check
      %p156 = pneg %p155
    $region14: #{sentiment_forward.12} parent=5 // pred_check_branch
      %158 = sbr.rel (%p156) target = $region16
    $region15: #{sentiment_forward.12} parent=5 // pred_region
      // Predicated region
      $region17: #{sentiment_forward.12} parent=15 // pred_check
        %p159 = pneg %p30
      $region18: #{sentiment_forward.12} parent=15 // pred_check_branch
        %161 = sbr.rel (%p159) target = $region20
      $region19: #{sentiment_forward.12} parent=15 // pred_region
        %p162 = scmp.lt.s32.totalorder %s10, 1
        %s163 = scalar_select %p162, %s10, 1
        %s164 = smul.addr %s163, 4
        %s165 = scalar_lea.vmem %s0, %s164
      $region20: #{sentiment_forward.12} parent=15 // pred_fallthru
        _
      // Predicated region
      $region21: #{sentiment_forward.12} parent=15 // pred_check
        %p166 = pneg %p56
      $region22: #{sentiment_forward.12} parent=15 // pred_check_branch
        %168 = sbr.rel (%p166) target = $region24
      $region23: #{sentiment_forward.12} parent=15 // pred_region
        %p169 = scmp.lt.s32.totalorder %s10, 1
        %s170 = scalar_select %p169, %s10, 1
        %s171 = smul.addr %s170, 4
        %s172 = scalar_lea.vmem %s1, %s171
      $region24: #{sentiment_forward.12} parent=15 // pred_fallthru
        _
      // Predicated region
      $region25: #{sentiment_forward.12} parent=15 // pred_check
        %p173 = pneg %p82
      $region26: #{sentiment_forward.12} parent=15 // pred_check_branch
        %175 = sbr.rel (%p173) target = $region28
      $region27: #{sentiment_forward.12} parent=15 // pred_region
        %p176 = scmp.lt.s32.totalorder %s10, 1
        %s177 = scalar_select %p176, %s10, 1
        %s178 = smul.addr %s177, 4
        %s179 = scalar_lea.vmem %s2, %s178
      $region28: #{sentiment_forward.12} parent=15 // pred_fallthru
        _
      // Predicated region
      $region29: #{sentiment_forward.12} parent=15 // pred_check
        %p180 = pneg %p108
      $region30: #{sentiment_forward.12} parent=15 // pred_check_branch
        %182 = sbr.rel (%p180) target = $region32
      $region31: #{sentiment_forward.12} parent=15 // pred_region
        %p183 = scmp.lt.s32.totalorder %s10, 1
        %s184 = scalar_select %p183, %s10, 1
        %s185 = scalar_lea.vmem %s3, %s184
      $region32: #{sentiment_forward.12} parent=15 // pred_fallthru
        _
    $region16: #{sentiment_forward.12} parent=5 // pred_fallthru
      _
    %p186 = scmp.le.s32.totalorder 1, %s10
    %p187 = scmp.lt.s32.totalorder %s10, 3
    %p188 = pnand %p186, %p187
    %p189 = pneg %p188
    // Predicated region
    $region33: #{sentiment_forward.12} parent=5 // pred_check
      _
    $region34: #{sentiment_forward.12} parent=5 // pred_check_branch
      %191 = sbr.rel (%p188) target = $region36
    $region35: #{sentiment_forward.12} parent=5 // pred_region
      %s192 = ssub.s32 %s10, 1
      %p193 = scmp.lt.s32.totalorder %s15, 1
      %s194 = scalar_select %p193, %s15, 1
      %s195 = smul.addr %s194, 4
      %s196 = scalar_lea.vmem %s0, %s195
      %p197 = pneg %p36
      %p198 = pneg %p33
      %p199 = scmp.lt.s32.totalorder %s15, 1
      %s200 = scalar_select %p199, %s15, 1
      %s201 = smul.addr %s200, 4
      %s202 = scalar_lea.vmem %s1, %s201
      %p203 = pneg %p62
      %p204 = pneg %p59
      %p205 = scmp.lt.s32.totalorder %s15, 1
      %s206 = scalar_select %p205, %s15, 1
      %s207 = smul.addr %s206, 4
      %s208 = scalar_lea.vmem %s2, %s207
      %p209 = pneg %p88
      %p210 = pneg %p85
      %p211 = scmp.lt.s32.totalorder %s15, 1
      %s212 = scalar_select %p211, %s15, 1
      %s213 = scalar_lea.vmem %s3, %s212
      %p214 = pneg %p114
      %p215 = pneg %p111
      %p216 = pneg %p140
      %p217 = pneg %p137
      %p218 = scmp.lt.s32.totalorder %s15, 1
      %s219 = scalar_select %p218, %s15, 1
      %s220 = smul.addr %s219, 4
      %s221 = scalar_lea.vmem %s4, %s220
      %p222 = scmp.lt.s32.totalorder %s15, 1
      %s223 = scalar_select %p222, %s15, 1
      %s224 = smul.addr %s223, 4
      %s225 = scalar_lea.vmem %s0, %s224
      %p226 = scmp.lt.s32.totalorder %s15, 1
      %s227 = scalar_select %p226, %s15, 1
      %s228 = smul.addr %s227, 4
      %s229 = scalar_lea.vmem %s1, %s228
      %p230 = scmp.lt.s32.totalorder %s15, 1
      %s231 = scalar_select %p230, %s15, 1
      %s232 = smul.addr %s231, 4
      %s233 = scalar_lea.vmem %s2, %s232
      %p234 = scmp.lt.s32.totalorder %s15, 1
      %s235 = scalar_select %p234, %s15, 1
      %s236 = scalar_lea.vmem %s3, %s235
      %p237 = scmp.lt.s32.totalorder %s15, 1
      %s238 = scalar_select %p237, %s15, 1
      %s239 = smul.addr %s238, 4
      %s240 = scalar_lea.vmem %s4, %s239
      %v242 = vld [vmem:[%s236] sm:$0x1]
      %v243 = vld [vmem:[%s225] sm:$0xf]
      %v244 = vld [vmem:[%s229] sm:$0xf]
      %v245 = vld [vmem:[%s233] sm:$0xf]
      %v247 = vlaneseq
      %v248 = vshrl.u32 %v247, 7
      %v249 = vsub.s32 0, %v248
      %v250 = vrot.slane %v242, %v249
      %v253 = vunpack.c.l.b16 %v244
      %v254 = vpack.c.b16 %v253, %v253
      %255 = vrot.lane.b32.xlu0 %v254, 96
      %v256 = vpop.permute.xlu0 %255
      %vm257 = vcmask 64512
      %v259 = vsel %vm257, %v243, 0
      %v262 = vsel %vm257, %v256, 0
      %264 = vmatprep.subr.bf16.mxu0 0
      %265 = vmatpush1.bf16.xpose.msra.mxu0 0
      %266 = vmatprep.subr.bf16.mxu0 0
      %267 = vmatpush1.bf16.xpose.msra.mxu0 0
      %268 = vmatprep.subr.bf16.mxu0 0
      %269 = vmatpush1.bf16.xpose.msra.mxu0 0
      %270 = vmatprep.subr.bf16.mxu0 0
      %271 = vmatpush1.bf16.xpose.msra.mxu0 0
      %272 = vmatprep.subr.bf16.mxu0 0
      %273 = vmatpush1.bf16.xpose.msra.mxu0 0
      %274 = vmatprep.subr.bf16.mxu0 0
      %275 = vmatpush1.bf16.xpose.msra.mxu0 0
      %276 = vmatprep.subr.bf16.mxu0 0
      %277 = vmatpush1.bf16.xpose.msra.mxu0 0
      %278 = vmatprep.subr.bf16.mxu0 0
      %279 = vmatpush1.bf16.xpose.msra.mxu0 %v262
      %280 = vmatprep.subr.bf16.mxu0 0
      %281 = vmatpush2.bf16.xpose.msra.mxu0 0
      %282 = vmatprep.subr.bf16.mxu0 0
      %283 = vmatpush2.bf16.xpose.msra.mxu0 0
      %284 = vmatprep.subr.bf16.mxu0 0
      %285 = vmatpush2.bf16.xpose.msra.mxu0 0
      %286 = vmatprep.subr.bf16.mxu0 0
      %287 = vmatpush2.bf16.xpose.msra.mxu0 0
      %288 = vmatprep.subr.bf16.mxu0 0
      %289 = vmatpush2.bf16.xpose.msra.mxu0 0
      %290 = vmatprep.subr.bf16.mxu0 0
      %291 = vmatpush2.bf16.xpose.msra.mxu0 0
      %292 = vmatprep.subr.bf16.mxu0 0
      %293 = vmatpush2.bf16.xpose.msra.mxu0 0
      %294 = vmatprep.subr.bf16.mxu0 0
      %295 = vmatpush2.bf16.xpose.msra.mxu0 0
      %296 = vmatprep.mubr.bf16.mxu0 0
      %297 = vmatmul.mubr.bf16.gmra.mxu0 %v259
      %v298 = vpop.f32.mrf.mxu0
      %v299 = vadd.f32 %v250, %v298
      %v300 = vpop.f32.mrf.mxu0
      %v301 = vpop.f32.mrf.mxu0
      %v302 = vpop.f32.mrf.mxu0
      %303 = vdwg.mxu0
      %v304 = vsel %vm257, %v299, -inf
      %305 = vmax.xlane.f32.xlu0 %v304
      %v306 = vpop.xlane.xlu0 %305
      %v307 = vsub.f32 %v299, %v306
      %v308 = vmul.f32 %v307, 1.442695
      %v309 = vpow.pop %v308
      %v310 = vsel %vm257, %v309, 0.0
      %311 = vadd.xlane.f32.xlu0 %v310
      %v312 = vpop.xlane.xlu0 %311
      %v313 = vrcp.pop %v312
      %v314 = vmul.f32 %v309, %v313
      %v315 = vpack.c.bf16 %v314, %v314
      %v317 = vunpack.c.l.b16 %v245
      %v318 = vpack.c.b16 %v317, %v317
      %319 = vrot.lane.b32.xlu0 %v318, 64
      %v320 = vpop.permute.xlu0 %319
      %v322 = vsel %vm257, %v315, 0
      %vm324 = vcmask 1043456
      %v326 = vsel %vm324, %v320, 0
      %328 = vmatprep.subr.bf16.mxu0 0
      %329 = vmatpush1.bf16.msra.mxu0 0
      %330 = vmatprep.subr.bf16.mxu0 0
      %331 = vmatpush1.bf16.msra.mxu0 0
      %332 = vmatprep.subr.bf16.mxu0 0
      %333 = vmatpush1.bf16.msra.mxu0 0
      %334 = vmatprep.subr.bf16.mxu0 0
      %335 = vmatpush1.bf16.msra.mxu0 0
      %336 = vmatprep.subr.bf16.mxu0 0
      %337 = vmatpush1.bf16.msra.mxu0 0
      %338 = vmatprep.subr.bf16.mxu0 0
      %339 = vmatpush1.bf16.msra.mxu0 0
      %340 = vmatprep.subr.bf16.mxu0 0
      %341 = vmatpush1.bf16.msra.mxu0 0
      %342 = vmatprep.subr.bf16.mxu0 0
      %343 = vmatpush1.bf16.msra.mxu0 %v326
      %344 = vmatprep.subr.bf16.mxu0 0
      %345 = vmatpush2.bf16.msra.mxu0 0
      %346 = vmatprep.subr.bf16.mxu0 0
      %347 = vmatpush2.bf16.msra.mxu0 0
      %348 = vmatprep.subr.bf16.mxu0 0
      %349 = vmatpush2.bf16.msra.mxu0 0
      %350 = vmatprep.subr.bf16.mxu0 0
      %351 = vmatpush2.bf16.msra.mxu0 0
      %352 = vmatprep.subr.bf16.mxu0 0
      %353 = vmatpush2.bf16.msra.mxu0 0
      %354 = vmatprep.subr.bf16.mxu0 0
      %355 = vmatpush2.bf16.msra.mxu0 0
      %356 = vmatprep.subr.bf16.mxu0 0
      %357 = vmatpush2.bf16.msra.mxu0 0
      %358 = vmatprep.subr.bf16.mxu0 0
      %359 = vmatpush2.bf16.msra.mxu0 0
      %360 = vmatprep.mubr.bf16.mxu0 0
      %361 = vmatmul.mubr.bf16.gmra.mxu0 %v322
      %v362 = vpop.f32.mrf.mxu0
      %v363 = vadd.f32 0.0, %v362
      %v364 = vpop.f32.mrf.mxu0
      %v365 = vpop.f32.mrf.mxu0
      %v366 = vpop.f32.mrf.mxu0
      %367 = vdwg.mxu0
      %v368 = vpack.c.bf16 %v363, %v363
      %vm369 = vcmask 60416
      %370 = vst.msk [vmem:[%s240] sm:$0xf] %vm369, %v368
      %v371 = vld [vmem:[%s225] sm:$0xf]
      %v372 = vld [vmem:[%s229] sm:$0xf]
      %v373 = vld [vmem:[%s233] sm:$0xf]
      %v375 = vunpack.c.l.b16 %v371
      %v376 = vpack.c.b16 %v375, %v375
      %377 = vrot.lane.b32.xlu0 %v376, 120
      %v378 = vpop.permute.xlu0 %377
      %v380 = vunpack.c.l.b16 %v372
      %v381 = vpack.c.b16 %v380, %v380
      %382 = vrot.lane.b32.xlu0 %v381, 88
      %v383 = vpop.permute.xlu0 %382
      %v385 = vsel %vm257, %v378, 0
      %v388 = vsel %vm257, %v383, 0
      %390 = vmatprep.subr.bf16.mxu0 0
      %391 = vmatpush1.bf16.xpose.msra.mxu0 0
      %392 = vmatprep.subr.bf16.mxu0 0
      %393 = vmatpush1.bf16.xpose.msra.mxu0 0
      %394 = vmatprep.subr.bf16.mxu0 0
      %395 = vmatpush1.bf16.xpose.msra.mxu0 0
      %396 = vmatprep.subr.bf16.mxu0 0
      %397 = vmatpush1.bf16.xpose.msra.mxu0 0
      %398 = vmatprep.subr.bf16.mxu0 0
      %399 = vmatpush1.bf16.xpose.msra.mxu0 0
      %400 = vmatprep.subr.bf16.mxu0 0
      %401 = vmatpush1.bf16.xpose.msra.mxu0 0
      %402 = vmatprep.subr.bf16.mxu0 0
      %403 = vmatpush1.bf16.xpose.msra.mxu0 0
      %404 = vmatprep.subr.bf16.mxu0 0
      %405 = vmatpush1.bf16.xpose.msra.mxu0 %v388
      %406 = vmatprep.subr.bf16.mxu0 0
      %407 = vmatpush2.bf16.xpose.msra.mxu0 0
      %408 = vmatprep.subr.bf16.mxu0 0
      %409 = vmatpush2.bf16.xpose.msra.mxu0 0
      %410 = vmatprep.subr.bf16.mxu0 0
      %411 = vmatpush2.bf16.xpose.msra.mxu0 0
      %412 = vmatprep.subr.bf16.mxu0 0
      %413 = vmatpush2.bf16.xpose.msra.mxu0 0
      %414 = vmatprep.subr.bf16.mxu0 0
      %415 = vmatpush2.bf16.xpose.msra.mxu0 0
      %416 = vmatprep.subr.bf16.mxu0 0
      %417 = vmatpush2.bf16.xpose.msra.mxu0 0
      %418 = vmatprep.subr.bf16.mxu0 0
      %419 = vmatpush2.bf16.xpose.msra.mxu0 0
      %420 = vmatprep.subr.bf16.mxu0 0
      %421 = vmatpush2.bf16.xpose.msra.mxu0 0
      %422 = vmatprep.mubr.bf16.mxu0 0
      %423 = vmatmul.mubr.bf16.gmra.mxu0 %v385
      %v424 = vpop.f32.mrf.mxu0
      %v425 = vadd.f32 %v250, %v424
      %v426 = vpop.f32.mrf.mxu0
      %v427 = vpop.f32.mrf.mxu0
      %v428 = vpop.f32.mrf.mxu0
      %429 = vdwg.mxu0
      %v430 = vsel %vm257, %v425, -inf
      %431 = vmax.xlane.f32.xlu0 %v430
      %v432 = vpop.xlane.xlu0 %431
      %v433 = vsub.f32 %v425, %v432
      %v434 = vmul.f32 %v433, 1.442695
      %v435 = vpow.pop %v434
      %v436 = vsel %vm257, %v435, 0.0
      %437 = vadd.xlane.f32.xlu0 %v436
      %v438 = vpop.xlane.xlu0 %437
      %v439 = vrcp.pop %v438
      %v440 = vmul.f32 %v435, %v439
      %v441 = vpack.c.bf16 %v440, %v440
      %v443 = vunpack.c.l.b16 %v373
      %v444 = vpack.c.b16 %v443, %v443
      %445 = vrot.lane.b32.xlu0 %v444, 56
      %v446 = vpop.permute.xlu0 %445
      %v448 = vsel %vm257, %v441, 0
      %v451 = vsel %vm324, %v446, 0
      %453 = vmatprep.subr.bf16.mxu0 0
      %454 = vmatpush1.bf16.msra.mxu0 0
      %455 = vmatprep.subr.bf16.mxu0 0
      %456 = vmatpush1.bf16.msra.mxu0 0
      %457 = vmatprep.subr.bf16.mxu0 0
      %458 = vmatpush1.bf16.msra.mxu0 0
      %459 = vmatprep.subr.bf16.mxu0 0
      %460 = vmatpush1.bf16.msra.mxu0 0
      %461 = vmatprep.subr.bf16.mxu0 0
      %462 = vmatpush1.bf16.msra.mxu0 0
      %463 = vmatprep.subr.bf16.mxu0 0
      %464 = vmatpush1.bf16.msra.mxu0 0
      %465 = vmatprep.subr.bf16.mxu0 0
      %466 = vmatpush1.bf16.msra.mxu0 0
      %467 = vmatprep.subr.bf16.mxu0 0
      %468 = vmatpush1.bf16.msra.mxu0 %v451
      %469 = vmatprep.subr.bf16.mxu0 0
      %470 = vmatpush2.bf16.msra.mxu0 0
      %471 = vmatprep.subr.bf16.mxu0 0
      %472 = vmatpush2.bf16.msra.mxu0 0
      %473 = vmatprep.subr.bf16.mxu0 0
      %474 = vmatpush2.bf16.msra.mxu0 0
      %475 = vmatprep.subr.bf16.mxu0 0
      %476 = vmatpush2.bf16.msra.mxu0 0
      %477 = vmatprep.subr.bf16.mxu0 0
      %478 = vmatpush2.bf16.msra.mxu0 0
      %479 = vmatprep.subr.bf16.mxu0 0
      %480 = vmatpush2.bf16.msra.mxu0 0
      %481 = vmatprep.subr.bf16.mxu0 0
      %482 = vmatpush2.bf16.msra.mxu0 0
      %483 = vmatprep.subr.bf16.mxu0 0
      %484 = vmatpush2.bf16.msra.mxu0 0
      %485 = vmatprep.mubr.bf16.mxu0 0
      %486 = vmatmul.mubr.bf16.gmra.mxu0 %v448
      %v487 = vpop.f32.mrf.mxu0
      %v488 = vadd.f32 0.0, %v487
      %v489 = vpop.f32.mrf.mxu0
      %v490 = vpop.f32.mrf.mxu0
      %v491 = vpop.f32.mrf.mxu0
      %492 = vdwg.mxu0
      %v493 = vpack.c.bf16 %v488, %v488
      %v495 = vunpack.c.l.b16 %v493
      %v496 = vpack.c.b16 %v495, %v495
      %497 = vrot.lane.b32.xlu0 %v496, 8
      %v498 = vpop.permute.xlu0 %497
      %vm500 = vcmask 126016
      %501 = vst.msk [vmem:[%s240] sm:$0xf] %vm500, %v498
      %v502 = vld [vmem:[%s225] sm:$0xf]
      %v503 = vld [vmem:[%s229] sm:$0xf]
      %v504 = vld [vmem:[%s233] sm:$0xf]
      %v506 = vunpack.c.l.b16 %v502
      %v507 = vpack.c.b16 %v506, %v506
      %508 = vrot.lane.b32.xlu0 %v507, 112
      %v509 = vpop.permute.xlu0 %508
      %v511 = vunpack.c.l.b16 %v503
      %v512 = vpack.c.b16 %v511, %v511
      %513 = vrot.lane.b32.xlu0 %v512, 80
      %v514 = vpop.permute.xlu0 %513
      %v516 = vsel %vm257, %v509, 0
      %v519 = vsel %vm257, %v514, 0
      %521 = vmatprep.subr.bf16.mxu0 0
      %522 = vmatpush1.bf16.xpose.msra.mxu0 0
      %523 = vmatprep.subr.bf16.mxu0 0
      %524 = vmatpush1.bf16.xpose.msra.mxu0 0
      %525 = vmatprep.subr.bf16.mxu0 0
      %526 = vmatpush1.bf16.xpose.msra.mxu0 0
      %527 = vmatprep.subr.bf16.mxu0 0
      %528 = vmatpush1.bf16.xpose.msra.mxu0 0
      %529 = vmatprep.subr.bf16.mxu0 0
      %530 = vmatpush1.bf16.xpose.msra.mxu0 0
      %531 = vmatprep.subr.bf16.mxu0 0
      %532 = vmatpush1.bf16.xpose.msra.mxu0 0
      %533 = vmatprep.subr.bf16.mxu0 0
      %534 = vmatpush1.bf16.xpose.msra.mxu0 0
      %535 = vmatprep.subr.bf16.mxu0 0
      %536 = vmatpush1.bf16.xpose.msra.mxu0 %v519
      %537 = vmatprep.subr.bf16.mxu0 0
      %538 = vmatpush2.bf16.xpose.msra.mxu0 0
      %539 = vmatprep.subr.bf16.mxu0 0
      %540 = vmatpush2.bf16.xpose.msra.mxu0 0
      %541 = vmatprep.subr.bf16.mxu0 0
      %542 = vmatpush2.bf16.xpose.msra.mxu0 0
      %543 = vmatprep.subr.bf16.mxu0 0
      %544 = vmatpush2.bf16.xpose.msra.mxu0 0
      %545 = vmatprep.subr.bf16.mxu0 0
      %546 = vmatpush2.bf16.xpose.msra.mxu0 0
      %547 = vmatprep.subr.bf16.mxu0 0
      %548 = vmatpush2.bf16.xpose.msra.mxu0 0
      %549 = vmatprep.subr.bf16.mxu0 0
      %550 = vmatpush2.bf16.xpose.msra.mxu0 0
      %551 = vmatprep.subr.bf16.mxu0 0
      %552 = vmatpush2.bf16.xpose.msra.mxu0 0
      %553 = vmatprep.mubr.bf16.mxu0 0
      %554 = vmatmul.mubr.bf16.gmra.mxu0 %v516
      %v555 = vpop.f32.mrf.mxu0
      %v556 = vadd.f32 %v250, %v555
      %v557 = vpop.f32.mrf.mxu0
      %v558 = vpop.f32.mrf.mxu0
      %v559 = vpop.f32.mrf.mxu0
      %560 = vdwg.mxu0
      %v561 = vsel %vm257, %v556, -inf
      %562 = vmax.xlane.f32.xlu0 %v561
      %v563 = vpop.xlane.xlu0 %562
      %v564 = vsub.f32 %v556, %v563
      %v565 = vmul.f32 %v564, 1.442695
      %v566 = vpow.pop %v565
      %v567 = vsel %vm257, %v566, 0.0
      %568 = vadd.xlane.f32.xlu0 %v567
      %v569 = vpop.xlane.xlu0 %568
      %v570 = vrcp.pop %v569
      %v571 = vmul.f32 %v566, %v570
      %v572 = vpack.c.bf16 %v571, %v571
      %v574 = vunpack.c.l.b16 %v504
      %v575 = vpack.c.b16 %v574, %v574
      %576 = vrot.lane.b32.xlu0 %v575, 48
      %v577 = vpop.permute.xlu0 %576
      %v579 = vsel %vm257, %v572, 0
      %v582 = vsel %vm324, %v577, 0
      %584 = vmatprep.subr.bf16.mxu0 0
      %585 = vmatpush1.bf16.msra.mxu0 0
      %586 = vmatprep.subr.bf16.mxu0 0
      %587 = vmatpush1.bf16.msra.mxu0 0
      %588 = vmatprep.subr.bf16.mxu0 0
      %589 = vmatpush1.bf16.msra.mxu0 0
      %590 = vmatprep.subr.bf16.mxu0 0
      %591 = vmatpush1.bf16.msra.mxu0 0
      %592 = vmatprep.subr.bf16.mxu0 0
      %593 = vmatpush1.bf16.msra.mxu0 0
      %594 = vmatprep.subr.bf16.mxu0 0
      %595 = vmatpush1.bf16.msra.mxu0 0
      %596 = vmatprep.subr.bf16.mxu0 0
      %597 = vmatpush1.bf16.msra.mxu0 0
      %598 = vmatprep.subr.bf16.mxu0 0
      %599 = vmatpush1.bf16.msra.mxu0 %v582
      %600 = vmatprep.subr.bf16.mxu0 0
      %601 = vmatpush2.bf16.msra.mxu0 0
      %602 = vmatprep.subr.bf16.mxu0 0
      %603 = vmatpush2.bf16.msra.mxu0 0
      %604 = vmatprep.subr.bf16.mxu0 0
      %605 = vmatpush2.bf16.msra.mxu0 0
      %606 = vmatprep.subr.bf16.mxu0 0
      %607 = vmatpush2.bf16.msra.mxu0 0
      %608 = vmatprep.subr.bf16.mxu0 0
      %609 = vmatpush2.bf16.msra.mxu0 0
      %610 = vmatprep.subr.bf16.mxu0 0
      %611 = vmatpush2.bf16.msra.mxu0 0
      %612 = vmatprep.subr.bf16.mxu0 0
      %613 = vmatpush2.bf16.msra.mxu0 0
      %614 = vmatprep.subr.bf16.mxu0 0
      %615 = vmatpush2.bf16.msra.mxu0 0
      %616 = vmatprep.mubr.bf16.mxu0 0
      %617 = vmatmul.mubr.bf16.gmra.mxu0 %v579
      %v618 = vpop.f32.mrf.mxu0
      %v619 = vadd.f32 0.0, %v618
      %v620 = vpop.f32.mrf.mxu0
      %v621 = vpop.f32.mrf.mxu0
      %v622 = vpop.f32.mrf.mxu0
      %623 = vdwg.mxu0
      %v624 = vpack.c.bf16 %v619, %v619
      %v626 = vunpack.c.l.b16 %v624
      %v627 = vpack.c.b16 %v626, %v626
      %628 = vrot.lane.b32.xlu0 %v627, 16
      %v629 = vpop.permute.xlu0 %628
      %vm631 = vcmask 191616
      %632 = vst.msk [vmem:[%s240] sm:$0xf] %vm631, %v629
      %v633 = vld [vmem:[%s225] sm:$0xf]
      %v634 = vld [vmem:[%s229] sm:$0xf]
      %v635 = vld [vmem:[%s233] sm:$0xf]
      %v637 = vunpack.c.l.b16 %v633
      %v638 = vpack.c.b16 %v637, %v637
      %639 = vrot.lane.b32.xlu0 %v638, 104
      %v640 = vpop.permute.xlu0 %639
      %v642 = vunpack.c.l.b16 %v634
      %v643 = vpack.c.b16 %v642, %v642
      %644 = vrot.lane.b32.xlu0 %v643, 72
      %v645 = vpop.permute.xlu0 %644
      %v647 = vsel %vm257, %v640, 0
      %v650 = vsel %vm257, %v645, 0
      %652 = vmatprep.subr.bf16.mxu0 0
      %653 = vmatpush1.bf16.xpose.msra.mxu0 0
      %654 = vmatprep.subr.bf16.mxu0 0
      %655 = vmatpush1.bf16.xpose.msra.mxu0 0
      %656 = vmatprep.subr.bf16.mxu0 0
      %657 = vmatpush1.bf16.xpose.msra.mxu0 0
      %658 = vmatprep.subr.bf16.mxu0 0
      %659 = vmatpush1.bf16.xpose.msra.mxu0 0
      %660 = vmatprep.subr.bf16.mxu0 0
      %661 = vmatpush1.bf16.xpose.msra.mxu0 0
      %662 = vmatprep.subr.bf16.mxu0 0
      %663 = vmatpush1.bf16.xpose.msra.mxu0 0
      %664 = vmatprep.subr.bf16.mxu0 0
      %665 = vmatpush1.bf16.xpose.msra.mxu0 0
      %666 = vmatprep.subr.bf16.mxu0 0
      %667 = vmatpush1.bf16.xpose.msra.mxu0 %v650
      %668 = vmatprep.subr.bf16.mxu0 0
      %669 = vmatpush2.bf16.xpose.msra.mxu0 0
      %670 = vmatprep.subr.bf16.mxu0 0
      %671 = vmatpush2.bf16.xpose.msra.mxu0 0
      %672 = vmatprep.subr.bf16.mxu0 0
      %673 = vmatpush2.bf16.xpose.msra.mxu0 0
      %674 = vmatprep.subr.bf16.mxu0 0
      %675 = vmatpush2.bf16.xpose.msra.mxu0 0
      %676 = vmatprep.subr.bf16.mxu0 0
      %677 = vmatpush2.bf16.xpose.msra.mxu0 0
      %678 = vmatprep.subr.bf16.mxu0 0
      %679 = vmatpush2.bf16.xpose.msra.mxu0 0
      %680 = vmatprep.subr.bf16.mxu0 0
      %681 = vmatpush2.bf16.xpose.msra.mxu0 0
      %682 = vmatprep.subr.bf16.mxu0 0
      %683 = vmatpush2.bf16.xpose.msra.mxu0 0
      %684 = vmatprep.mubr.bf16.mxu0 0
      %685 = vmatmul.mubr.bf16.gmra.mxu0 %v647
      %v686 = vpop.f32.mrf.mxu0
      %v687 = vadd.f32 %v250, %v686
      %v688 = vpop.f32.mrf.mxu0
      %v689 = vpop.f32.mrf.mxu0
      %v690 = vpop.f32.mrf.mxu0
      %691 = vdwg.mxu0
      %v692 = vsel %vm257, %v687, -inf
      %693 = vmax.xlane.f32.xlu0 %v692
      %v694 = vpop.xlane.xlu0 %693
      %v695 = vsub.f32 %v687, %v694
      %v696 = vmul.f32 %v695, 1.442695
      %v697 = vpow.pop %v696
      %v698 = vsel %vm257, %v697, 0.0
      %699 = vadd.xlane.f32.xlu0 %v698
      %v700 = vpop.xlane.xlu0 %699
      %v701 = vrcp.pop %v700
      %v702 = vmul.f32 %v697, %v701
      %v703 = vpack.c.bf16 %v702, %v702
      %v705 = vunpack.c.l.b16 %v635
      %v706 = vpack.c.b16 %v705, %v705
      %707 = vrot.lane.b32.xlu0 %v706, 40
      %v708 = vpop.permute.xlu0 %707
      %v710 = vsel %vm257, %v703, 0
      %v713 = vsel %vm324, %v708, 0
      %715 = vmatprep.subr.bf16.mxu0 0
      %716 = vmatpush1.bf16.msra.mxu0 0
      %717 = vmatprep.subr.bf16.mxu0 0
      %718 = vmatpush1.bf16.msra.mxu0 0
      %719 = vmatprep.subr.bf16.mxu0 0
      %720 = vmatpush1.bf16.msra.mxu0 0
      %721 = vmatprep.subr.bf16.mxu0 0
      %722 = vmatpush1.bf16.msra.mxu0 0
      %723 = vmatprep.subr.bf16.mxu0 0
      %724 = vmatpush1.bf16.msra.mxu0 0
      %725 = vmatprep.subr.bf16.mxu0 0
      %726 = vmatpush1.bf16.msra.mxu0 0
      %727 = vmatprep.subr.bf16.mxu0 0
      %728 = vmatpush1.bf16.msra.mxu0 0
      %729 = vmatprep.subr.bf16.mxu0 0
      %730 = vmatpush1.bf16.msra.mxu0 %v713
      %731 = vmatprep.subr.bf16.mxu0 0
      %732 = vmatpush2.bf16.msra.mxu0 0
      %733 = vmatprep.subr.bf16.mxu0 0
      %734 = vmatpush2.bf16.msra.mxu0 0
      %735 = vmatprep.subr.bf16.mxu0 0
      %736 = vmatpush2.bf16.msra.mxu0 0
      %737 = vmatprep.subr.bf16.mxu0 0
      %738 = vmatpush2.bf16.msra.mxu0 0
      %739 = vmatprep.subr.bf16.mxu0 0
      %740 = vmatpush2.bf16.msra.mxu0 0
      %741 = vmatprep.subr.bf16.mxu0 0
      %742 = vmatpush2.bf16.msra.mxu0 0
      %743 = vmatprep.subr.bf16.mxu0 0
      %744 = vmatpush2.bf16.msra.mxu0 0
      %745 = vmatprep.subr.bf16.mxu0 0
      %746 = vmatpush2.bf16.msra.mxu0 0
      %747 = vmatprep.mubr.bf16.mxu0 0
      %748 = vmatmul.mubr.bf16.gmra.mxu0 %v710
      %v749 = vpop.f32.mrf.mxu0
      %v750 = vadd.f32 0.0, %v749
      %v751 = vpop.f32.mrf.mxu0
      %v752 = vpop.f32.mrf.mxu0
      %v753 = vpop.f32.mrf.mxu0
      %754 = vdwg.mxu0
      %v755 = vpack.c.bf16 %v750, %v750
      %v757 = vunpack.c.l.b16 %v755
      %v758 = vpack.c.b16 %v757, %v757
      %759 = vrot.lane.b32.xlu0 %v758, 24
      %v760 = vpop.permute.xlu0 %759
      %vm762 = vcmask 257216
      %763 = vst.msk [vmem:[%s240] sm:$0xf] %vm762, %v760
      %p764 = scmp.lt.s32.totalorder %s15, 1
      %s765 = scalar_select %p764, %s15, 1
      %s766 = smul.addr %s765, 4
      %s767 = scalar_lea.vmem %s4, %s766
      // Predicated region
      $region37: #{sentiment_forward.12} parent=35 // pred_check
        %p768 = pneg %p137
      $region38: #{sentiment_forward.12} parent=35 // pred_check_branch
        %770 = sbr.rel (%p768) target = $region40
      $region39: #{sentiment_forward.12} parent=35 // pred_region
        _
      $region40: #{sentiment_forward.12} parent=35 // pred_fallthru
        _
    $region36: #{sentiment_forward.12} parent=5 // pred_fallthru
      _
    %p771 = scmp.le.s32.totalorder 2, %s10
    // Predicated region
    $region41: #{sentiment_forward.12} parent=5 // pred_check
      %p772 = pneg %p771
    $region42: #{sentiment_forward.12} parent=5 // pred_check_branch
      %774 = sbr.rel (%p772) target = $region44
    $region43: #{sentiment_forward.12} parent=5 // pred_region
      %s775 = ssub.s32 %s10, 2
      // Predicated region
      $region45: #{sentiment_forward.12} parent=43 // pred_check
        %p776 = pneg %p143
      $region46: #{sentiment_forward.12} parent=43 // pred_check_branch
        %778 = sbr.rel (%p776) target = $region48
      $region47: #{sentiment_forward.12} parent=43 // pred_region
        %p779 = scmp.lt.s32.totalorder %s16, 1
        %s780 = scalar_select %p779, %s16, 1
        %s781 = smul.addr %s780, 4
        %s782 = scalar_lea.vmem %s4, %s781
      $region48: #{sentiment_forward.12} parent=43 // pred_fallthru
        _
    $region44: #{sentiment_forward.12} parent=5 // pred_fallthru
      _
  $region6: #{sentiment_forward.12} parent=0 // loop_footer
    %s14 = sadd.s32 1, %s10
  $region7: #{sentiment_forward.12} parent=0 // loop_footer_branch
    %9 = sbr.rel target = $region3
  $region8: #{sentiment_forward.12} parent=0 // loop_exit
    _

// kernel: sentiment_forward.14
$region0: #{sentiment_forward.14}
  #allocation0 [shape = 'u32[]', space=smem, size = 0x4, offset = 0x4, fixed_abs, tag = 'smem constant byte address 0x4 - core index']
  #allocation1 [shape = 'u32[144,128]{1,0:T(1,128)}', space=vmem, size = 0x12000, scoped, tag = 'internal scratch']
  #allocation2 [shape = 'f32[16,32]{1,0:T(8,128)}', space=vmem, size = 0x2000, scoped, tag = 'scratch operand']
  %s0 = inlined_call_operand.vmem [shape: bf16[16,32], index: 0, kind: input, shape index: {}]
  %s1 = inlined_call_operand.vmem [shape: bf16[32,64], index: 1, kind: input, shape index: {}]
  %s2 = inlined_call_operand.vmem [shape: f32[1,64], index: 2, kind: input, shape index: {}]
  %s3 = inlined_call_operand.vmem [shape: bf16[64,32], index: 3, kind: input, shape index: {}]
  %s4 = inlined_call_operand.vmem [shape: f32[1,32], index: 4, kind: input, shape index: {}]
  %s5 = inlined_call_operand.vmem [shape: f32[1,32], index: 5, kind: input, shape index: {}]
  %s6 = inlined_call_operand.vmem [shape: f32[1,32], index: 6, kind: input, shape index: {}]
  %s7 = inlined_call_operand.vmem [shape: bf16[16,32], index: 7, kind: output, shape index: {}]
  %s8 = sld [smem:[#allocation0]]
  $region46: #{sentiment_forward.14} parent=0
    _
  %s10 = ssub.s32 1, %s8
  %s11 = scalar_select 0, %s10, %s8
  // Predicated region
  $region2: #{sentiment_forward.14} parent=0 // pred_check
    _
  $region3: #{sentiment_forward.14} parent=0 // pred_check_branch
    %13 = sbr.rel (0) target = $region5
  $region4: #{sentiment_forward.14} parent=0 // pred_region
    _
  $region5: #{sentiment_forward.14} parent=0 // pred_fallthru
    _
  // Predicated region
  $region6: #{sentiment_forward.14} parent=0 // pred_check
    _
  $region7: #{sentiment_forward.14} parent=0 // pred_check_branch
    %15 = sbr.rel (0) target = $region9
  $region8: #{sentiment_forward.14} parent=0 // pred_region
    _
  $region9: #{sentiment_forward.14} parent=0 // pred_fallthru
    _
  // Predicated region
  $region10: #{sentiment_forward.14} parent=0 // pred_check
    _
  $region11: #{sentiment_forward.14} parent=0 // pred_check_branch
    %17 = sbr.rel (0) target = $region13
  $region12: #{sentiment_forward.14} parent=0 // pred_region
    _
  $region13: #{sentiment_forward.14} parent=0 // pred_fallthru
    _
  // Predicated region
  $region14: #{sentiment_forward.14} parent=0 // pred_check
    _
  $region15: #{sentiment_forward.14} parent=0 // pred_check_branch
    %19 = sbr.rel (0) target = $region17
  $region16: #{sentiment_forward.14} parent=0 // pred_region
    _
  $region17: #{sentiment_forward.14} parent=0 // pred_fallthru
    _
  // Predicated region
  $region18: #{sentiment_forward.14} parent=0 // pred_check
    _
  $region19: #{sentiment_forward.14} parent=0 // pred_check_branch
    %21 = sbr.rel (0) target = $region21
  $region20: #{sentiment_forward.14} parent=0 // pred_region
    _
  $region21: #{sentiment_forward.14} parent=0 // pred_fallthru
    _
  // Predicated region
  $region22: #{sentiment_forward.14} parent=0 // pred_check
    _
  $region23: #{sentiment_forward.14} parent=0 // pred_check_branch
    %23 = sbr.rel (0) target = $region25
  $region24: #{sentiment_forward.14} parent=0 // pred_region
    _
  $region25: #{sentiment_forward.14} parent=0 // pred_fallthru
    _
  // Predicated region
  $region26: #{sentiment_forward.14} parent=0 // pred_check
    _
  $region27: #{sentiment_forward.14} parent=0 // pred_check_branch
    %25 = sbr.rel (0) target = $region29
  $region28: #{sentiment_forward.14} parent=0 // pred_region
    _
  $region29: #{sentiment_forward.14} parent=0 // pred_fallthru
    _
  %p27 = scmp.eq.s32.totalorder 0, 0
  // Predicated region
  $region30: #{sentiment_forward.14} parent=0 // pred_check
    %p28 = pneg %p27
  $region31: #{sentiment_forward.14} parent=0 // pred_check_branch
    %30 = sbr.rel (%p28) target = $region33
  $region32: #{sentiment_forward.14} parent=0 // pred_region
    %vm31 = vcmask 261120
    %32 = vst.msk [vmem:[#allocation2] sm:$0xff] %vm31, 0.0
    %33 = vst.msk [vmem:[#allocation2 + $0x8] sm:$0xff] %vm31, 0.0
  $region33: #{sentiment_forward.14} parent=0 // pred_fallthru
    _
  %v34 = vld [vmem:[%s0] sm:$0xf]
  %v35 = vld [vmem:[%s0 + $0x4] sm:$0xf]
  %v36 = vld [vmem:[%s1] sm:$0xf]
  %v37 = vld [vmem:[%s1 + $0x4] sm:$0xf]
  %v38 = vld [vmem:[%s1 + $0x8] sm:$0xf]
  %v39 = vld [vmem:[%s1 + $0xc] sm:$0xf]
  %v40 = vld [vmem:[%s2] sm:$0x1]
  %v42 = vlaneseq
  %v43 = vshrl.u32 %v42, 7
  %v44 = vsub.s32 0, %v43
  %v45 = vrot.slane %v40, %v44
  %v49 = vunpack.c.l.b16 %v34
  %v50 = vunpack.c.l.b16 %v35
  %v51 = vpack.c.b16 %v50, %v49
  %v56 = vunpack.c.l.b16 %v36
  %v57 = vunpack.c.l.b16 %v37
  %v58 = vunpack.c.l.b16 %v38
  %v59 = vunpack.c.l.b16 %v39
  %v60 = vpack.c.b16 %v57, %v56
  %v61 = vpack.c.b16 %v59, %v58
  %vm64 = vcmask 261120
  %v66 = vsel %vm64, %v51, 0
  %68 = vmatprep.subr.bf16.mxu0 0
  %69 = vmatpush1.bf16.msra.mxu0 0
  %70 = vmatprep.subr.bf16.mxu0 0
  %71 = vmatpush1.bf16.msra.mxu0 0
  %72 = vmatprep.subr.bf16.mxu0 0
  %73 = vmatpush1.bf16.msra.mxu0 0
  %74 = vmatprep.subr.bf16.mxu0 0
  %75 = vmatpush1.bf16.msra.mxu0 0
  %76 = vmatprep.subr.bf16.mxu0 0
  %77 = vmatpush1.bf16.msra.mxu0 0
  %78 = vmatprep.subr.bf16.mxu0 0
  %79 = vmatpush1.bf16.msra.mxu0 0
  %80 = vmatprep.subr.bf16.mxu0 0
  %81 = vmatpush1.bf16.msra.mxu0 %v61
  %82 = vmatprep.subr.bf16.mxu0 0
  %83 = vmatpush1.bf16.msra.mxu0 %v60
  %84 = vmatprep.subr.bf16.mxu0 0
  %85 = vmatpush2.bf16.msra.mxu0 0
  %86 = vmatprep.subr.bf16.mxu0 0
  %87 = vmatpush2.bf16.msra.mxu0 0
  %88 = vmatprep.subr.bf16.mxu0 0
  %89 = vmatpush2.bf16.msra.mxu0 0
  %90 = vmatprep.subr.bf16.mxu0 0
  %91 = vmatpush2.bf16.msra.mxu0 0
  %92 = vmatprep.subr.bf16.mxu0 0
  %93 = vmatpush2.bf16.msra.mxu0 0
  %94 = vmatprep.subr.bf16.mxu0 0
  %95 = vmatpush2.bf16.msra.mxu0 0
  %96 = vmatprep.subr.bf16.mxu0 0
  %97 = vmatpush2.bf16.msra.mxu0 0
  %98 = vmatprep.subr.bf16.mxu0 0
  %99 = vmatpush2.bf16.msra.mxu0 0
  %100 = vmatprep.mubr.bf16.mxu0 0
  %101 = vmatmul.mubr.bf16.gmra.mxu0 %v66
  %v102 = vpop.f32.mrf.mxu0
  %v103 = vadd.f32 %v45, %v102
  %v104 = vpop.f32.mrf.mxu0
  %v105 = vpop.f32.mrf.mxu0
  %v106 = vadd.f32 %v45, %v105
  %v107 = vpop.f32.mrf.mxu0
  %108 = vdwg.mxu0
  %v109 = vmul.f32 %v103, 0.5
  %v110 = vmul.f32 %v106, 0.5
  %v111 = vmul.f32 %v103, 0.70710677
  %v112 = vmul.f32 %v106, 0.70710677
  %vm113 = vcmp.ge.f32.partialorder %v111, 0.0
  %vm114 = vcmp.ge.f32.partialorder %v112, 0.0
  %v115 = vsel %vm113, 1.0, -1.0
  %v116 = vsel %vm114, 1.0, -1.0
  %v117 = vand.u32 2147483647, %v111
  %v118 = vand.u32 2147483647, %v112
  %v119 = vmul.f32 %v117, 0.3275911
  %v120 = vmul.f32 %v118, 0.3275911
  %v121 = vadd.f32 %v119, 1.0
  %v122 = vadd.f32 %v120, 1.0
  %v123 = vrcp.pop %v121
  %v124 = vrcp.pop %v122
  %v125 = vmul.f32 %v123, 1.0614054
  %v126 = vmul.f32 %v124, 1.0614054
  %v127 = vadd.f32 %v125, -1.4531521
  %v128 = vadd.f32 %v126, -1.4531521
  %v129 = vmul.f32 %v127, %v123
  %v130 = vmul.f32 %v128, %v124
  %v131 = vadd.f32 %v129, 1.4214138
  %v132 = vadd.f32 %v130, 1.4214138
  %v133 = vmul.f32 %v131, %v123
  %v134 = vmul.f32 %v132, %v124
  %v135 = vadd.f32 %v133, -0.28449672
  %v136 = vadd.f32 %v134, -0.28449672
  %v137 = vmul.f32 %v135, %v123
  %v138 = vmul.f32 %v136, %v124
  %v139 = vadd.f32 %v137, 0.2548296
  %v140 = vadd.f32 %v138, 0.2548296
  %v141 = vmul.f32 %v139, %v123
  %v142 = vmul.f32 %v140, %v124
  %v143 = vsub.f32 0.0, %v117
  %v144 = vsub.f32 0.0, %v118
  %v145 = vmul.f32 %v143, %v117
  %v146 = vmul.f32 %v144, %v118
  %v147 = vmul.f32 %v145, 1.442695
  %v148 = vpow.pop %v147
  %v149 = vmul.f32 %v146, 1.442695
  %v150 = vpow.pop %v149
  %v151 = vmul.f32 %v141, %v148
  %v152 = vmul.f32 %v142, %v150
  %v153 = vsub.f32 1.0, %v151
  %v154 = vsub.f32 1.0, %v152
  %v155 = vmul.f32 %v115, %v153
  %v156 = vmul.f32 %v116, %v154
  %v157 = vadd.f32 %v155, 1.0
  %v158 = vadd.f32 %v156, 1.0
  %v159 = vmul.f32 %v109, %v157
  %v160 = vmul.f32 %v110, %v158
  %v161 = vld [vmem:[#allocation2] sm:$0xff]
  %v162 = vld [vmem:[#allocation2 + $0x8] sm:$0xff]
  %v163 = vpack.c.bf16 %v160, %v159
  %v164 = vld [vmem:[%s3] sm:$0xf]
  %v165 = vld [vmem:[%s3 + $0x4] sm:$0xf]
  %v166 = vld [vmem:[%s3 + $0x8] sm:$0xf]
  %v167 = vld [vmem:[%s3 + $0xc] sm:$0xf]
  %v168 = vld [vmem:[%s3 + $0x10] sm:$0xf]
  %v169 = vld [vmem:[%s3 + $0x14] sm:$0xf]
  %v170 = vld [vmem:[%s3 + $0x18] sm:$0xf]
  %v171 = vld [vmem:[%s3 + $0x1c] sm:$0xf]
  %v180 = vunpack.c.l.b16 %v164
  %v181 = vunpack.c.l.b16 %v165
  %v182 = vunpack.c.l.b16 %v166
  %v183 = vunpack.c.l.b16 %v167
  %v184 = vunpack.c.l.b16 %v168
  %v185 = vunpack.c.l.b16 %v169
  %v186 = vunpack.c.l.b16 %v170
  %v187 = vunpack.c.l.b16 %v171
  %v188 = vpack.c.b16 %v181, %v180
  %v189 = vpack.c.b16 %v183, %v182
  %v190 = vpack.c.b16 %v185, %v184
  %v191 = vpack.c.b16 %v187, %v186
  %vm196 = vcmask 523264
  %v198 = vsel %vm196, %v163, 0
  %200 = vmatprep.subr.bf16.mxu0 0
  %201 = vmatpush1.bf16.msra.mxu0 0
  %202 = vmatprep.subr.bf16.mxu0 0
  %203 = vmatpush1.bf16.msra.mxu0 0
  %204 = vmatprep.subr.bf16.mxu0 0
  %205 = vmatpush1.bf16.msra.mxu0 0
  %206 = vmatprep.subr.bf16.mxu0 0
  %207 = vmatpush1.bf16.msra.mxu0 0
  %208 = vmatprep.subr.bf16.mxu0 0
  %209 = vmatpush1.bf16.msra.mxu0 %v191
  %210 = vmatprep.subr.bf16.mxu0 0
  %211 = vmatpush1.bf16.msra.mxu0 %v190
  %212 = vmatprep.subr.bf16.mxu0 0
  %213 = vmatpush1.bf16.msra.mxu0 %v189
  %214 = vmatprep.subr.bf16.mxu0 0
  %215 = vmatpush1.bf16.msra.mxu0 %v188
  %216 = vmatprep.subr.bf16.mxu0 0
  %217 = vmatpush2.bf16.msra.mxu0 0
  %218 = vmatprep.subr.bf16.mxu0 0
  %219 = vmatpush2.bf16.msra.mxu0 0
  %220 = vmatprep.subr.bf16.mxu0 0
  %221 = vmatpush2.bf16.msra.mxu0 0
  %222 = vmatprep.subr.bf16.mxu0 0
  %223 = vmatpush2.bf16.msra.mxu0 0
  %224 = vmatprep.subr.bf16.mxu0 0
  %225 = vmatpush2.bf16.msra.mxu0 0
  %226 = vmatprep.subr.bf16.mxu0 0
  %227 = vmatpush2.bf16.msra.mxu0 0
  %228 = vmatprep.subr.bf16.mxu0 0
  %229 = vmatpush2.bf16.msra.mxu0 0
  %230 = vmatprep.subr.bf16.mxu0 0
  %231 = vmatpush2.bf16.msra.mxu0 0
  %232 = vmatprep.mubr.bf16.mxu0 0
  %233 = vmatmul.mubr.bf16.gmra.mxu0 %v198
  %v234 = vpop.f32.mrf.mxu0
  %v235 = vadd.f32 0.0, %v234
  %v236 = vpop.f32.mrf.mxu0
  %v237 = vpop.f32.mrf.mxu0
  %v238 = vadd.f32 0.0, %v237
  %v239 = vpop.f32.mrf.mxu0
  %240 = vdwg.mxu0
  %v241 = vadd.f32 %v161, %v235
  %v242 = vadd.f32 %v162, %v238
  %243 = vst.msk [vmem:[#allocation2] sm:$0xff] %vm64, %v241
  %244 = vst.msk [vmem:[#allocation2 + $0x8] sm:$0xff] %vm64, %v242
  // Predicated region
  $region34: #{sentiment_forward.14} parent=0 // pred_check
    %p245 = pneg %p27
  $region35: #{sentiment_forward.14} parent=0 // pred_check_branch
    %247 = sbr.rel (%p245) target = $region37
  $region36: #{sentiment_forward.14} parent=0 // pred_region
    %v248 = vld [vmem:[#allocation2] sm:$0xff]
    %v249 = vld [vmem:[#allocation2 + $0x8] sm:$0xff]
    %v250 = vld [vmem:[%s4] sm:$0x1]
    %v252 = vlaneseq
    %v253 = vshrl.u32 %v252, 7
    %v254 = vsub.s32 0, %v253
    %v255 = vrot.slane %v250, %v254
    %v257 = vadd.f32 %v248, %v255
    %v258 = vadd.f32 %v249, %v255
    %v259 = vld [vmem:[%s0] sm:$0xf]
    %v260 = vld [vmem:[%s0 + $0x4] sm:$0xf]
    %v261 = vunpack.c.l.bf16 %v259
    %v262 = vunpack.c.l.bf16 %v260
    %v263 = vadd.f32 %v257, %v261
    %v264 = vadd.f32 %v258, %v262
    %v265 = vld [vmem:[%s5] sm:$0x1]
    %v266 = vld [vmem:[%s6] sm:$0x1]
    %v267 = vsel %vm64, %v263, 0.0
    %268 = vadd.xlane.f32.xlu0 %v267
    %v269 = vpop.xlane.xlu0 %268
    %v270 = vsel %vm64, %v264, 0.0
    %271 = vadd.xlane.f32.xlu0 %v270
    %v272 = vpop.xlane.xlu0 %271
    %v273 = vrcp.pop 32.0
    %v274 = vmul.f32 %v269, %v273
    %v275 = vmul.f32 %v272, %v273
    %v276 = vsub.f32 %v263, %v274
    %v277 = vsub.f32 %v264, %v275
    %v278 = vmul.f32 %v276, %v276
    %v279 = vmul.f32 %v277, %v277
    %v280 = vsel %vm64, %v278, 0.0
    %281 = vadd.xlane.f32.xlu0 %v280
    %v282 = vpop.xlane.xlu0 %281
    %v283 = vsel %vm64, %v279, 0.0
    %284 = vadd.xlane.f32.xlu0 %v283
    %v285 = vpop.xlane.xlu0 %284
    %v286 = vmul.f32 %v282, %v273
    %v287 = vmul.f32 %v285, %v273
    %v288 = vadd.f32 %v286, 1e-12
    %v289 = vadd.f32 %v287, 1e-12
    %v290 = vrsqrt.pop %v288
    %v291 = vrsqrt.pop %v289
    %v292 = vmul.f32 %v276, %v290
    %v293 = vmul.f32 %v277, %v291
    %v295 = vlaneseq
    %v296 = vshrl.u32 %v295, 7
    %v297 = vsub.s32 0, %v296
    %v298 = vrot.slane %v265, %v297
    %v300 = vmul.f32 %v292, %v298
    %v301 = vmul.f32 %v293, %v298
    %v303 = vlaneseq
    %v304 = vshrl.u32 %v303, 7
    %v305 = vsub.s32 0, %v304
    %v306 = vrot.slane %v266, %v305
    %v308 = vadd.f32 %v300, %v306
    %v309 = vadd.f32 %v301, %v306
    %v310 = vpack.c.bf16 %v309, %v308
    %v312 = vunpack.c.l.b16 %v310
    %v313 = vunpack.c.h.b16 %v310
    %v314 = vpack.c.b16 %v312, %v312
    %v315 = vpack.c.b16 %v313, %v313
    %vm318 = vcmask 257024
    %319 = vst.msk [vmem:[%s7] sm:$0xf] %vm318, %v314
    %320 = vst.msk [vmem:[%s7 + $0x4] sm:$0xf] %vm318, %v315
  $region37: #{sentiment_forward.14} parent=0 // pred_fallthru
    _
  // Predicated region
  $region38: #{sentiment_forward.14} parent=0 // pred_check
    _
  $region39: #{sentiment_forward.14} parent=0 // pred_check_branch
    %322 = sbr.rel (0) target = $region41
  $region40: #{sentiment_forward.14} parent=0 // pred_region
    _
  $region41: #{sentiment_forward.14} parent=0 // pred_fallthru
    _
  // Predicated region
  $region42: #{sentiment_forward.14} parent=0 // pred_check
    _
  $region43: #{sentiment_forward.14} parent=0 // pred_check_branch
    %324 = sbr.rel (0) target = $region45
  $region44: #{sentiment_forward.14} parent=0 // pred_region
    _
  $region45: #{sentiment_forward.14} parent=0 // pred_fallthru
    _

// kernel: sentiment_forward.19
$region0: #{sentiment_forward.19}
  #allocation0 [shape = 'u32[]', space=smem, size = 0x4, offset = 0x4, fixed_abs, tag = 'smem constant byte address 0x4 - core index']
  #allocation1 [shape = 'u32[144,128]{1,0:T(1,128)}', space=vmem, size = 0x12000, scoped, tag = 'internal scratch']
  %s0 = inlined_call_operand.vmem [shape: bf16[2,32], index: 0, kind: input, shape index: {}]
  %s1 = inlined_call_operand.vmem [shape: bf16[32,32], index: 1, kind: input, shape index: {}]
  %s2 = inlined_call_operand.vmem [shape: f32[1,32], index: 2, kind: input, shape index: {}]
  %s3 = inlined_call_operand.vmem [shape: bf16[32,3], index: 3, kind: input, shape index: {}]
  %s4 = inlined_call_operand.vmem [shape: f32[1,3], index: 4, kind: input, shape index: {}]
  %s5 = inlined_call_operand.hbm [shape: f32[2,3], index: 5, kind: output, shape index: {}]
  %s6 = sld [smem:[#allocation0]]
  $region30: #{sentiment_forward.19} parent=0
    _
  %s8 = ssub.s32 1, %s6
  %s9 = scalar_select 0, %s8, %s6
  $region1: #{sentiment_forward.19} parent=0
    #allocation2 [shape = 'u8[1024]{0}', space=vmem, size = 0x400, scoped, tag = 'output window, operand 0, single buffered']
    #allocation3 [shape = 's32[1]{0}', space=sflag, size = 0x4, scoped, tag = 'scoped memory for sentiment_forward.19']
    %10 = vsyncpa [#allocation3], 0
    // Predicated region
    $region2: #{sentiment_forward.19} parent=1 // pred_check
      _
    $region3: #{sentiment_forward.19} parent=1 // pred_check_branch
      %12 = sbr.rel (0) target = $region5
    $region4: #{sentiment_forward.19} parent=1 // pred_region
      _
    $region5: #{sentiment_forward.19} parent=1 // pred_fallthru
      _
    // Predicated region
    $region6: #{sentiment_forward.19} parent=1 // pred_check
      _
    $region7: #{sentiment_forward.19} parent=1 // pred_check_branch
      %14 = sbr.rel (0) target = $region9
    $region8: #{sentiment_forward.19} parent=1 // pred_region
      _
    $region9: #{sentiment_forward.19} parent=1 // pred_fallthru
      _
    // Predicated region
    $region10: #{sentiment_forward.19} parent=1 // pred_check
      _
    $region11: #{sentiment_forward.19} parent=1 // pred_check_branch
      %16 = sbr.rel (0) target = $region13
    $region12: #{sentiment_forward.19} parent=1 // pred_region
      _
    $region13: #{sentiment_forward.19} parent=1 // pred_fallthru
      _
    // Predicated region
    $region14: #{sentiment_forward.19} parent=1 // pred_check
      _
    $region15: #{sentiment_forward.19} parent=1 // pred_check_branch
      %18 = sbr.rel (0) target = $region17
    $region16: #{sentiment_forward.19} parent=1 // pred_region
      _
    $region17: #{sentiment_forward.19} parent=1 // pred_fallthru
      _
    // Predicated region
    $region18: #{sentiment_forward.19} parent=1 // pred_check
      _
    $region19: #{sentiment_forward.19} parent=1 // pred_check_branch
      %20 = sbr.rel (0) target = $region21
    $region20: #{sentiment_forward.19} parent=1 // pred_region
      _
    $region21: #{sentiment_forward.19} parent=1 // pred_fallthru
      _
    %v22 = vld [vmem:[%s0] sm:$0x1]
    %v23 = vld [vmem:[%s1] sm:$0xf]
    %v24 = vld [vmem:[%s1 + $0x4] sm:$0xf]
    %v25 = vld [vmem:[%s1 + $0x8] sm:$0xf]
    %v26 = vld [vmem:[%s1 + $0xc] sm:$0xf]
    %v27 = vld [vmem:[%s2] sm:$0x1]
    %v29 = vlaneseq
    %v30 = vshrl.u32 %v29, 7
    %v31 = vsub.s32 0, %v30
    %v32 = vrot.slane %v27, %v31
    %v38 = vunpack.c.l.b16 %v23
    %v39 = vunpack.c.l.b16 %v24
    %v40 = vunpack.c.l.b16 %v25
    %v41 = vunpack.c.l.b16 %v26
    %v42 = vpack.c.b16 %v39, %v38
    %v43 = vpack.c.b16 %v41, %v40
    %vm46 = vcmask 261120
    %v48 = vsel %vm46, %v22, 0
    %50 = vmatprep.subr.bf16.mxu0 0
    %51 = vmatpush1.bf16.msra.mxu0 0
    %52 = vmatprep.subr.bf16.mxu0 0
    %53 = vmatpush1.bf16.msra.mxu0 0
    %54 = vmatprep.subr.bf16.mxu0 0
    %55 = vmatpush1.bf16.msra.mxu0 0
    %56 = vmatprep.subr.bf16.mxu0 0
    %57 = vmatpush1.bf16.msra.mxu0 0
    %58 = vmatprep.subr.bf16.mxu0 0
    %59 = vmatpush1.bf16.msra.mxu0 0
    %60 = vmatprep.subr.bf16.mxu0 0
    %61 = vmatpush1.bf16.msra.mxu0 0
    %62 = vmatprep.subr.bf16.mxu0 0
    %63 = vmatpush1.bf16.msra.mxu0 %v43
    %64 = vmatprep.subr.bf16.mxu0 0
    %65 = vmatpush1.bf16.msra.mxu0 %v42
    %66 = vmatprep.subr.bf16.mxu0 0
    %67 = vmatpush2.bf16.msra.mxu0 0
    %68 = vmatprep.subr.bf16.mxu0 0
    %69 = vmatpush2.bf16.msra.mxu0 0
    %70 = vmatprep.subr.bf16.mxu0 0
    %71 = vmatpush2.bf16.msra.mxu0 0
    %72 = vmatprep.subr.bf16.mxu0 0
    %73 = vmatpush2.bf16.msra.mxu0 0
    %74 = vmatprep.subr.bf16.mxu0 0
    %75 = vmatpush2.bf16.msra.mxu0 0
    %76 = vmatprep.subr.bf16.mxu0 0
    %77 = vmatpush2.bf16.msra.mxu0 0
    %78 = vmatprep.subr.bf16.mxu0 0
    %79 = vmatpush2.bf16.msra.mxu0 0
    %80 = vmatprep.subr.bf16.mxu0 0
    %81 = vmatpush2.bf16.msra.mxu0 0
    %82 = vmatprep.mubr.bf16.mxu0 0
    %83 = vmatmul.mubr.bf16.gmra.mxu0 %v48
    %v84 = vpop.f32.mrf.mxu0
    %v85 = vadd.f32 %v32, %v84
    %v86 = vpop.f32.mrf.mxu0
    %v87 = vpop.f32.mrf.mxu0
    %v88 = vpop.f32.mrf.mxu0
    %89 = vdwg.mxu0
    %v90 = vtanh.pop %v85
    %v91 = vpack.c.bf16 %v90, %v90
    %v92 = vld [vmem:[%s3] sm:$0xf]
    %v93 = vld [vmem:[%s3 + $0x4] sm:$0xf]
    %v94 = vld [vmem:[%s3 + $0x8] sm:$0xf]
    %v95 = vld [vmem:[%s3 + $0xc] sm:$0xf]
    %v96 = vld [vmem:[%s4] sm:$0x1]
    %v98 = vlaneseq
    %v99 = vshrl.u32 %v98, 7
    %v100 = vsub.s32 0, %v99
    %v101 = vrot.slane %v96, %v100
    %v107 = vunpack.c.l.b16 %v92
    %v108 = vunpack.c.l.b16 %v93
    %v109 = vunpack.c.l.b16 %v94
    %v110 = vunpack.c.l.b16 %v95
    %v111 = vpack.c.b16 %v108, %v107
    %v112 = vpack.c.b16 %v110, %v109
    %v116 = vsel %vm46, %v91, 0
    %118 = vmatprep.subr.bf16.mxu0 0
    %119 = vmatpush1.bf16.msra.mxu0 0
    %120 = vmatprep.subr.bf16.mxu0 0
    %121 = vmatpush1.bf16.msra.mxu0 0
    %122 = vmatprep.subr.bf16.mxu0 0
    %123 = vmatpush1.bf16.msra.mxu0 0
    %124 = vmatprep.subr.bf16.mxu0 0
    %125 = vmatpush1.bf16.msra.mxu0 0
    %126 = vmatprep.subr.bf16.mxu0 0
    %127 = vmatpush1.bf16.msra.mxu0 0
    %128 = vmatprep.subr.bf16.mxu0 0
    %129 = vmatpush1.bf16.msra.mxu0 0
    %130 = vmatprep.subr.bf16.mxu0 0
    %131 = vmatpush1.bf16.msra.mxu0 %v112
    %132 = vmatprep.subr.bf16.mxu0 0
    %133 = vmatpush1.bf16.msra.mxu0 %v111
    %134 = vmatprep.subr.bf16.mxu0 0
    %135 = vmatpush2.bf16.msra.mxu0 0
    %136 = vmatprep.subr.bf16.mxu0 0
    %137 = vmatpush2.bf16.msra.mxu0 0
    %138 = vmatprep.subr.bf16.mxu0 0
    %139 = vmatpush2.bf16.msra.mxu0 0
    %140 = vmatprep.subr.bf16.mxu0 0
    %141 = vmatpush2.bf16.msra.mxu0 0
    %142 = vmatprep.subr.bf16.mxu0 0
    %143 = vmatpush2.bf16.msra.mxu0 0
    %144 = vmatprep.subr.bf16.mxu0 0
    %145 = vmatpush2.bf16.msra.mxu0 0
    %146 = vmatprep.subr.bf16.mxu0 0
    %147 = vmatpush2.bf16.msra.mxu0 0
    %148 = vmatprep.subr.bf16.mxu0 0
    %149 = vmatpush2.bf16.msra.mxu0 0
    %150 = vmatprep.mubr.bf16.mxu0 0
    %151 = vmatmul.mubr.bf16.gmra.mxu0 %v116
    %v152 = vpop.f32.mrf.mxu0
    %v153 = vadd.f32 %v101, %v152
    %v154 = vpop.f32.mrf.mxu0
    %v155 = vpop.f32.mrf.mxu0
    %v156 = vpop.f32.mrf.mxu0
    %157 = vdwg.mxu0
    %vm158 = vcmask 17408
    %159 = vst.msk [vmem:[#allocation2] sm:$0x3] %vm158, %v153
    // Predicated region
    $region22: #{sentiment_forward.19} parent=1 // pred_check
      _
    $region23: #{sentiment_forward.19} parent=1 // pred_check_branch
      %161 = sbr.rel (0) target = $region25
    $region24: #{sentiment_forward.19} parent=1 // pred_region
      %s163 = ssub.s32 32, 32
      %164 = vsyncadd [#allocation3], %s163
      %s166 = sshll.u32 [#allocation2], 4
      %s167 = int_to_ptr.vmem [resolvable:$true] %s166
      %169 = dma.vmem_to_hbm [thread:$0]  %s167, 32, %s5, [#allocation3]
    $region25: #{sentiment_forward.19} parent=1 // pred_fallthru
      _
    // Predicated region
    $region26: #{sentiment_forward.19} parent=1 // pred_check
      _
    $region27: #{sentiment_forward.19} parent=1 // pred_check_branch
      %171 = sbr.rel (0) target = $region29
    $region28: #{sentiment_forward.19} parent=1 // pred_region
      %172 = dma.done [#allocation3], 32
    $region29: #{sentiment_forward.19} parent=1 // pred_fallthru
      _
    %173 = vsyncpa [#allocation3], 1

</llo_original>
